<compile_context>
chip_gen: v5e
topology: v5e:2x2
jax: 0.10.0
libtpu: 0.0.40
codegen_flags: <defaults>
</compile_context>

<pallas_src>
import functools

import jax
import jax.numpy as jnp
from jax import lax
from jax.experimental import pallas as pl
from jax.experimental.pallas import tpu as pltpu

NEG_FILL = -2000000000.0   # torch.masked_fill value used by the reference module
LN_EPS = 1e-5              # nn.LayerNorm default eps


def sub_graph_kernel(x_ref,                          # VMEM, (TP, N, H)
                     lens_ref,                       # VMEM, (TP, 1) int32
                     w1_ref, b1_ref, g_ref, be_ref,  # stacked per-layer params
                     w2_ref, b2_ref,
                     out_ref,                        # VMEM, (TP, H)
                     *, depth, tile_p, n_nodes, hidden):
    TP, N, H = tile_p, n_nodes, hidden
    Hh = H // 2

    lens = lens_ref[...]                                              # (TP, 1)
    node_idx = lax.broadcasted_iota(jnp.int32, (TP, N, 1), 1)
    valid = node_idx < lens[:, None, :]                               # (TP, N, 1)

    def ln_relu(h, l):
        # LayerNorm (biased variance) with the affine folded into the rsqrt
        # scale (rsqrt lands on the EUP slot).  var = E[h^2] - mean^2 removes
        # the full-tile (h - mean) subtract; clamp guards the tiny negative
        # cancellation residue (only reachable on discarded padded rows).
        mean = jnp.mean(h, axis=-1, keepdims=True)
        var = jnp.maximum(jnp.mean(h * h, axis=-1, keepdims=True) - mean * mean, 0.0)
        scale = g_ref[l] * lax.rsqrt(var + LN_EPS)
        return jnp.maximum(h * scale + (be_ref[l] - mean * scale), 0.0)

    # ---- layer 0: input is the raw (TP*N, H) features ------------------------
    x2 = x_ref[...].reshape(TP * N, H)
    h = jnp.dot(x2, w1_ref[0], preferred_element_type=jnp.float32) + b1_ref[0]
    h = ln_relu(h, 0)
    y = jnp.dot(h, w2_ref[0], preferred_element_type=jnp.float32) + b2_ref[0]   # (TP*N, Hh)
    mx = jnp.max(jnp.where(valid, y.reshape(TP, N, Hh), NEG_FILL), axis=1)      # (TP, Hh)

    # ---- layers 1..depth-1: split-W1 instead of broadcast + concat -----------
    #   cat([mx, y]) @ W1 == mx @ W1[:H/2] + y @ W1[H/2:]
    for l in range(1, depth):                          # depth static -> unrolled
        w1l = w1_ref[l]                                                 # (H, H)
        h_y = jnp.dot(y, w1l[Hh:, :], preferred_element_type=jnp.float32)     # (TP*N, H)
        h_mx = jnp.dot(mx, w1l[:Hh, :], preferred_element_type=jnp.float32)   # (TP, H)
        h = h_y.reshape(TP, N, H) + h_mx[:, None, :] + b1_ref[l]
        h = ln_relu(h.reshape(TP * N, H), l)
        y = jnp.dot(h, w2_ref[l], preferred_element_type=jnp.float32) + b2_ref[l]
        mx = jnp.max(jnp.where(valid, y.reshape(TP, N, Hh), NEG_FILL), axis=1)

    # ---- final masked max over cat([broadcast(mx), y]) ------------------------
    # Second half == mx exactly (same masked reduction).  First half == mx
    # except when the polyline has padded nodes AND mx < NEG_FILL, in which
    # case the reference max picks NEG_FILL from a padded row; reproduce that.
    # (Assumes no *valid* y value ever drops below NEG_FILL = -2e9, which holds
    # for the reference module's magnitudes.)
    has_pad = lens < N                                                  # (TP, 1)
    first = jnp.where(has_pad, jnp.maximum(mx, NEG_FILL), mx)
    # Write the two halves directly — no lane-axis concatenate / XLU relayout.
    out_ref[:, :Hh] = first
    out_ref[:, Hh:] = mx


def _round_up(v, m):
    return ((v + m - 1) // m) * m


def _choose_tile_p(P, N):
    """VMEM/DMA-budget based number of polylines per grid step."""
    # ~6 live (tile_p*N, 128)-lane-padded f32 buffers per step (double-buffered
    # x block, flattened copy, h, y, temps).  Keep the estimate well under the
    # v5e 16 MiB scoped default and v7x's 64 MiB total VMEM; we also raise
    # vmem_limit_bytes to 32 MiB explicitly.
    per_poly_bytes = N * 128 * 4 * 6
    budget = 12 << 20
    tp = max(8, min(budget // per_poly_bytes, 2048) // 8 * 8)
    # Keep >= 2 grid steps whenever the 8-padded problem has more than one
    # sublane group so the "parallel" axis can feed both v7x TensorCores.
    P8 = _round_up(P, 8)
    if P8 > 8:
        tp = min(tp, _round_up(-(-P // 2), 8))
    return min(tp, P8)


def sub_graph_forward(x, lengths, params, depth, tile_p=None):
    """x: (P, N, H) f32, lengths: (P,) int, params: stacked per-layer weights."""
    P, N, H = x.shape
    Hh = H // 2
    w1, b1, g, be, w2, b2 = params

    if tile_p is None:
        tile_p = _choose_tile_p(P, N)
    else:
        tile_p = min(max(8, _round_up(tile_p, 8)), _round_up(P, 8))

    grid_p = pl.cdiv(P, tile_p)
    P_pad = grid_p * tile_p
    if P_pad != P:
        x = jnp.pad(x, ((0, P_pad - P), (0, 0), (0, 0)))
        lengths = jnp.pad(lengths, (0, P_pad - P))   # padded polylines: length 0
    lens2d = lengths.astype(jnp.int32).reshape(P_pad, 1)

    kernel = functools.partial(sub_graph_kernel, depth=depth, tile_p=tile_p,
                               n_nodes=N, hidden=H)

    out = pl.pallas_call(
        kernel,
        out_shape=jax.ShapeDtypeStruct((P_pad, H), jnp.float32),
        grid=(grid_p,),
        in_specs=[
            pl.BlockSpec((tile_p, N, H), lambda p: (p, 0, 0)),   # x (tile of polylines)
            pl.BlockSpec((tile_p, 1), lambda p: (p, 0)),         # lengths
            pl.BlockSpec((depth, H, H), lambda p: (0, 0, 0)),    # W1 (shared, grid-invariant)
            pl.BlockSpec((depth, 1, H), lambda p: (0, 0, 0)),    # b1
            pl.BlockSpec((depth, 1, H), lambda p: (0, 0, 0)),    # LN gamma
            pl.BlockSpec((depth, 1, H), lambda p: (0, 0, 0)),    # LN beta
            pl.BlockSpec((depth, H, Hh), lambda p: (0, 0, 0)),   # W2
            pl.BlockSpec((depth, 1, Hh), lambda p: (0, 0, 0)),   # b2
        ],
        out_specs=pl.BlockSpec((tile_p, H), lambda p: (p, 0)),
        compiler_params=pltpu.CompilerParams(
            dimension_semantics=("parallel",),
            vmem_limit_bytes=32 * 1024 * 1024,
        ),
    )(x, lens2d, w1, b1, g, be, w2, b2)
    return out[:P]


def ref_forward(x, lengths, params, depth):
    """Pure-JAX reference mirroring the PyTorch module exactly."""
    w1, b1, g, be, w2, b2 = params
    P, N, H = x.shape
    Hh = H // 2
    valid = (jnp.arange(N)[None, :, None] < lengths[:, None, None])  # (P, N, 1)
    for l in range(depth):
        h = x @ w1[l] + b1[l]
        mean = h.mean(-1, keepdims=True)
        var = jnp.square(h - mean).mean(-1, keepdims=True)
        h = (h - mean) / jnp.sqrt(var + LN_EPS) * g[l] + be[l]
        h = jnp.maximum(h, 0.0)
        y = h @ w2[l] + b2[l]
        mx = jnp.max(jnp.where(valid, y, NEG_FILL), axis=1, keepdims=True)
        x = jnp.concatenate([jnp.broadcast_to(mx, (P, N, Hh)), y], axis=-1)
    return jnp.max(jnp.where(valid, x, NEG_FILL), axis=1)


def init_params(key, hidden, depth):
    """Deterministic synthetic parameters (shapes from NormMLP(H, H//2))."""
    Hh = hidden // 2
    ks = jax.random.split(key, 4)
    w1 = 0.1 * jax.random.normal(ks[0], (depth, hidden, hidden), jnp.float32)
    b1 = 0.05 * jax.random.normal(ks[1], (depth, 1, hidden), jnp.float32)
    g = jnp.ones((depth, 1, hidden), jnp.float32)        # LayerNorm weight
    be = jnp.zeros((depth, 1, hidden), jnp.float32)      # LayerNorm bias
    w2 = 0.1 * jax.random.normal(ks[2], (depth, hidden, Hh), jnp.float32)
    b2 = 0.05 * jax.random.normal(ks[3], (depth, 1, Hh), jnp.float32)
    return (w1, b1, g, be, w2, b2)


if __name__ == "__main__":
    key = jax.random.PRNGKey(0)

    # Primary config (matches the module's intended small shapes).
    P, N, H, DEPTH = 4, 8, 32, 3          # polylines, max nodes, hidden_size, depth
    kx, kp, kx2, kl2, kx3, kl3 = jax.random.split(key, 6)
    x = jax.random.normal(kx, (P, N, H), jnp.float32)
    lengths = jnp.array([8, 5, 3, 1], jnp.int32)          # #valid vectors per polyline
    params = init_params(kp, H, DEPTH)

    out = sub_graph_forward(x, lengths, params, DEPTH)
    out = jax.block_until_ready(out)
    ref = ref_forward(x, lengths, params, DEPTH)
    assert out.shape == (P, H)
    assert jnp.allclose(out, ref, rtol=1e-4, atol=1e-4), "mismatch vs pure-JAX reference"

    # Second config exercising the multi-step grid + polyline padding path.
    P2, N2 = 20, 16
    x2 = jax.random.normal(kx2, (P2, N2, H), jnp.float32)
    lengths2 = jax.random.randint(kl2, (P2,), 1, N2 + 1).astype(jnp.int32)
    out2 = jax.block_until_ready(sub_graph_forward(x2, lengths2, params, DEPTH))
    ref2 = ref_forward(x2, lengths2, params, DEPTH)
    assert out2.shape == (P2, H)
    assert jnp.allclose(out2, ref2, rtol=1e-4, atol=1e-4), "mismatch (tiled path)"

    # Third config exercising the byte-budget tile size with a larger P.
    P3, N3 = 300, 8
    x3 = jax.random.normal(kx3, (P3, N3, H), jnp.float32)
    lengths3 = jax.random.randint(kl3, (P3,), 1, N3 + 1).astype(jnp.int32)
    out3 = jax.block_until_ready(sub_graph_forward(x3, lengths3, params, DEPTH))
    ref3 = ref_forward(x3, lengths3, params, DEPTH)
    assert out3.shape == (P3, H)
    assert jnp.allclose(out3, ref3, rtol=1e-4, atol=1e-4), "mismatch (large-P path)"

    print("KERNEL_OK")
</pallas_src>

<mosaic_0001>
module attributes {stable_mosaic.version = 11 : i64} {
  func.func @sub_graph_kernel(%arg0: i32, %arg1: memref<8x8x32xf32, #tpu.memory_space<vmem>>, %arg2: memref<8x1xi32, #tpu.memory_space<vmem>>, %arg3: memref<3x32x32xf32, #tpu.memory_space<vmem>>, %arg4: memref<3x1x32xf32, #tpu.memory_space<vmem>>, %arg5: memref<3x1x32xf32, #tpu.memory_space<vmem>>, %arg6: memref<3x1x32xf32, #tpu.memory_space<vmem>>, %arg7: memref<3x32x16xf32, #tpu.memory_space<vmem>>, %arg8: memref<3x1x16xf32, #tpu.memory_space<vmem>>, %arg9: memref<8x32xf32, #tpu.memory_space<vmem>>) attributes {dimension_semantics = [#tpu.dimension_semantics<parallel>], iteration_bounds = array<i64: 1>, scalar_prefetch = 0 : i64, scratch_operands = 0 : i64, tpu.core_type = #tpu.core_type<tc>, window_params = [{transform_indices = @transform_0, window_bounds = array<i64: 8, 8, 32>}, {transform_indices = @transform_1, window_bounds = array<i64: 8, 1>}, {pipeline_mode = #tpu.pipeline_mode<synchronous>, transform_indices = @transform_2, window_bounds = array<i64: 3, 32, 32>}, {pipeline_mode = #tpu.pipeline_mode<synchronous>, transform_indices = @transform_3, window_bounds = array<i64: 3, 1, 32>}, {pipeline_mode = #tpu.pipeline_mode<synchronous>, transform_indices = @transform_4, window_bounds = array<i64: 3, 1, 32>}, {pipeline_mode = #tpu.pipeline_mode<synchronous>, transform_indices = @transform_5, window_bounds = array<i64: 3, 1, 32>}, {pipeline_mode = #tpu.pipeline_mode<synchronous>, transform_indices = @transform_6, window_bounds = array<i64: 3, 32, 16>}, {pipeline_mode = #tpu.pipeline_mode<synchronous>, transform_indices = @transform_7, window_bounds = array<i64: 3, 1, 16>}, {transform_indices = @transform_8, window_bounds = array<i64: 8, 32>}]} {
    %c0 = arith.constant 0 : index
    %c0_0 = arith.constant 0 : index
    %0 = vector.load %arg2[%c0, %c0_0] : memref<8x1xi32, #tpu.memory_space<vmem>>, vector<8x1xi32>
    %1 = tpu.iota {dimensions = array<i32: 1>} : vector<8x8x1xi32>
    %2 = vector.shape_cast %0 : vector<8x1xi32> to vector<8x1x1xi32>
    %3 = vector.broadcast %2 : vector<8x1x1xi32> to vector<8x8x1xi32>
    %4 = arith.cmpi slt, %1, %3 : vector<8x8x1xi32>
    %c0_1 = arith.constant 0 : index
    %c0_2 = arith.constant 0 : index
    %c0_3 = arith.constant 0 : index
    %5 = vector.load %arg1[%c0_1, %c0_2, %c0_3] : memref<8x8x32xf32, #tpu.memory_space<vmem>>, vector<8x8x32xf32>
    %6 = vector.shape_cast %5 : vector<8x8x32xf32> to vector<64x32xf32>
    %c0_4 = arith.constant 0 : index
    %c0_5 = arith.constant 0 : index
    %c0_6 = arith.constant 0 : index
    %7 = vector.load %arg3[%c0_4, %c0_5, %c0_6] : memref<3x32x32xf32, #tpu.memory_space<vmem>>, vector<1x32x32xf32>
    %8 = vector.shape_cast %7 : vector<1x32x32xf32> to vector<32x32xf32>
    %cst = arith.constant dense<0.000000e+00> : vector<64x32xf32>
    %9 = tpu.matmul %6, %8, %cst {dimension_numbers = #tpu.dot_dimension_numbers<[1], [0], [0], [1], [0, 0, 1, 1], [], []>} : vector<64x32xf32>, vector<32x32xf32>, vector<64x32xf32> -> vector<64x32xf32>
    %c0_7 = arith.constant 0 : index
    %c0_8 = arith.constant 0 : index
    %c0_9 = arith.constant 0 : index
    %10 = vector.load %arg4[%c0_7, %c0_8, %c0_9] : memref<3x1x32xf32, #tpu.memory_space<vmem>>, vector<1x1x32xf32>
    %11 = vector.shape_cast %10 : vector<1x1x32xf32> to vector<1x32xf32>
    %12 = vector.broadcast %11 : vector<1x32xf32> to vector<64x32xf32>
    %13 = arith.addf %9, %12 : vector<64x32xf32>
    %cst_10 = arith.constant dense<0.000000e+00> : vector<64xf32>
    %14 = vector.multi_reduction <add>, %13, %cst_10 [1] : vector<64x32xf32> to vector<64xf32>
    %15 = vector.shape_cast %14 : vector<64xf32> to vector<64x1xf32>
    %cst_11 = arith.constant 3.200000e+01 : f32
    %16 = vector.broadcast %cst_11 : f32 to vector<64x1xf32>
    %17 = arith.divf %15, %16 : vector<64x1xf32>
    %18 = arith.mulf %13, %13 : vector<64x32xf32>
    %cst_12 = arith.constant dense<0.000000e+00> : vector<64xf32>
    %19 = vector.multi_reduction <add>, %18, %cst_12 [1] : vector<64x32xf32> to vector<64xf32>
    %20 = vector.shape_cast %19 : vector<64xf32> to vector<64x1xf32>
    %cst_13 = arith.constant 3.200000e+01 : f32
    %21 = vector.broadcast %cst_13 : f32 to vector<64x1xf32>
    %22 = arith.divf %20, %21 : vector<64x1xf32>
    %23 = arith.mulf %17, %17 : vector<64x1xf32>
    %24 = arith.subf %22, %23 : vector<64x1xf32>
    %cst_14 = arith.constant 0.000000e+00 : f32
    %25 = vector.broadcast %cst_14 : f32 to vector<64x1xf32>
    %26 = arith.maximumf %24, %25 : vector<64x1xf32>
    %c0_15 = arith.constant 0 : index
    %c0_16 = arith.constant 0 : index
    %c0_17 = arith.constant 0 : index
    %27 = vector.load %arg5[%c0_15, %c0_16, %c0_17] : memref<3x1x32xf32, #tpu.memory_space<vmem>>, vector<1x1x32xf32>
    %28 = vector.shape_cast %27 : vector<1x1x32xf32> to vector<1x32xf32>
    %cst_18 = arith.constant 9.99999974E-6 : f32
    %29 = vector.broadcast %cst_18 : f32 to vector<64x1xf32>
    %30 = arith.addf %26, %29 : vector<64x1xf32>
    %31 = math.rsqrt %30 : vector<64x1xf32>
    %32 = vector.broadcast %28 : vector<1x32xf32> to vector<64x32xf32>
    %33 = vector.broadcast %31 : vector<64x1xf32> to vector<64x32xf32>
    %34 = arith.mulf %32, %33 : vector<64x32xf32>
    %35 = arith.mulf %13, %34 : vector<64x32xf32>
    %c0_19 = arith.constant 0 : index
    %c0_20 = arith.constant 0 : index
    %c0_21 = arith.constant 0 : index
    %36 = vector.load %arg6[%c0_19, %c0_20, %c0_21] : memref<3x1x32xf32, #tpu.memory_space<vmem>>, vector<1x1x32xf32>
    %37 = vector.shape_cast %36 : vector<1x1x32xf32> to vector<1x32xf32>
    %38 = vector.broadcast %17 : vector<64x1xf32> to vector<64x32xf32>
    %39 = arith.mulf %38, %34 : vector<64x32xf32>
    %40 = vector.broadcast %37 : vector<1x32xf32> to vector<64x32xf32>
    %41 = arith.subf %40, %39 : vector<64x32xf32>
    %42 = arith.addf %35, %41 : vector<64x32xf32>
    %cst_22 = arith.constant 0.000000e+00 : f32
    %43 = vector.broadcast %cst_22 : f32 to vector<64x32xf32>
    %44 = arith.maximumf %42, %43 : vector<64x32xf32>
    %c0_23 = arith.constant 0 : index
    %c0_24 = arith.constant 0 : index
    %c0_25 = arith.constant 0 : index
    %45 = vector.load %arg7[%c0_23, %c0_24, %c0_25] : memref<3x32x16xf32, #tpu.memory_space<vmem>>, vector<1x32x16xf32>
    %46 = vector.shape_cast %45 : vector<1x32x16xf32> to vector<32x16xf32>
    %cst_26 = arith.constant dense<0.000000e+00> : vector<64x16xf32>
    %47 = tpu.matmul %44, %46, %cst_26 {dimension_numbers = #tpu.dot_dimension_numbers<[1], [0], [0], [1], [0, 0, 1, 1], [], []>} : vector<64x32xf32>, vector<32x16xf32>, vector<64x16xf32> -> vector<64x16xf32>
    %c0_27 = arith.constant 0 : index
    %c0_28 = arith.constant 0 : index
    %c0_29 = arith.constant 0 : index
    %48 = vector.load %arg8[%c0_27, %c0_28, %c0_29] : memref<3x1x16xf32, #tpu.memory_space<vmem>>, vector<1x1x16xf32>
    %49 = vector.shape_cast %48 : vector<1x1x16xf32> to vector<1x16xf32>
    %50 = vector.broadcast %49 : vector<1x16xf32> to vector<64x16xf32>
    %51 = arith.addf %47, %50 : vector<64x16xf32>
    %52 = vector.shape_cast %51 : vector<64x16xf32> to vector<8x8x16xf32>
    %cst_30 = arith.constant -2.000000e+09 : f32
    %53 = vector.shape_cast %4 : vector<8x8x1xi1> to vector<8x8x1xi1>
    %54 = vector.broadcast %53 : vector<8x8x1xi1> to vector<8x8x16xi1>
    %55 = vector.broadcast %cst_30 : f32 to vector<8x8x16xf32>
    %56 = arith.select %54, %52, %55 : vector<8x8x16xi1>, vector<8x8x16xf32>
    %cst_31 = arith.constant dense<0xFF800000> : vector<8x16xf32>
    %57 = vector.multi_reduction <maximumf>, %56, %cst_31 [1] : vector<8x8x16xf32> to vector<8x16xf32>
    %c1 = arith.constant 1 : index
    %c0_32 = arith.constant 0 : index
    %c0_33 = arith.constant 0 : index
    %58 = vector.load %arg3[%c1, %c0_32, %c0_33] : memref<3x32x32xf32, #tpu.memory_space<vmem>>, vector<1x32x32xf32>
    %59 = vector.shape_cast %58 : vector<1x32x32xf32> to vector<32x32xf32>
    %60 = vector.extract_strided_slice %59 {offsets = [16, 0], sizes = [16, 32], strides = [1, 1]} : vector<32x32xf32> to vector<16x32xf32>
    %cst_34 = arith.constant dense<0.000000e+00> : vector<64x32xf32>
    %61 = tpu.matmul %51, %60, %cst_34 {dimension_numbers = #tpu.dot_dimension_numbers<[1], [0], [0], [1], [0, 0, 1, 1], [], []>} : vector<64x16xf32>, vector<16x32xf32>, vector<64x32xf32> -> vector<64x32xf32>
    %62 = vector.extract_strided_slice %59 {offsets = [0, 0], sizes = [16, 32], strides = [1, 1]} : vector<32x32xf32> to vector<16x32xf32>
    %cst_35 = arith.constant dense<0.000000e+00> : vector<8x32xf32>
    %63 = tpu.matmul %57, %62, %cst_35 {dimension_numbers = #tpu.dot_dimension_numbers<[1], [0], [0], [1], [0, 0, 1, 1], [], []>} : vector<8x16xf32>, vector<16x32xf32>, vector<8x32xf32> -> vector<8x32xf32>
    %64 = vector.shape_cast %61 : vector<64x32xf32> to vector<8x8x32xf32>
    %65 = vector.shape_cast %63 : vector<8x32xf32> to vector<8x1x32xf32>
    %66 = vector.broadcast %65 : vector<8x1x32xf32> to vector<8x8x32xf32>
    %67 = arith.addf %64, %66 : vector<8x8x32xf32>
    %c1_36 = arith.constant 1 : index
    %c0_37 = arith.constant 0 : index
    %c0_38 = arith.constant 0 : index
    %68 = vector.load %arg4[%c1_36, %c0_37, %c0_38] : memref<3x1x32xf32, #tpu.memory_space<vmem>>, vector<1x1x32xf32>
    %69 = vector.shape_cast %68 : vector<1x1x32xf32> to vector<1x32xf32>
    %70 = vector.shape_cast %69 : vector<1x32xf32> to vector<1x1x32xf32>
    %71 = vector.broadcast %70 : vector<1x1x32xf32> to vector<8x8x32xf32>
    %72 = arith.addf %67, %71 : vector<8x8x32xf32>
    %73 = vector.shape_cast %72 : vector<8x8x32xf32> to vector<64x32xf32>
    %cst_39 = arith.constant dense<0.000000e+00> : vector<64xf32>
    %74 = vector.multi_reduction <add>, %73, %cst_39 [1] : vector<64x32xf32> to vector<64xf32>
    %75 = vector.shape_cast %74 : vector<64xf32> to vector<64x1xf32>
    %cst_40 = arith.constant 3.200000e+01 : f32
    %76 = vector.broadcast %cst_40 : f32 to vector<64x1xf32>
    %77 = arith.divf %75, %76 : vector<64x1xf32>
    %78 = arith.mulf %73, %73 : vector<64x32xf32>
    %cst_41 = arith.constant dense<0.000000e+00> : vector<64xf32>
    %79 = vector.multi_reduction <add>, %78, %cst_41 [1] : vector<64x32xf32> to vector<64xf32>
    %80 = vector.shape_cast %79 : vector<64xf32> to vector<64x1xf32>
    %cst_42 = arith.constant 3.200000e+01 : f32
    %81 = vector.broadcast %cst_42 : f32 to vector<64x1xf32>
    %82 = arith.divf %80, %81 : vector<64x1xf32>
    %83 = arith.mulf %77, %77 : vector<64x1xf32>
    %84 = arith.subf %82, %83 : vector<64x1xf32>
    %cst_43 = arith.constant 0.000000e+00 : f32
    %85 = vector.broadcast %cst_43 : f32 to vector<64x1xf32>
    %86 = arith.maximumf %84, %85 : vector<64x1xf32>
    %c1_44 = arith.constant 1 : index
    %c0_45 = arith.constant 0 : index
    %c0_46 = arith.constant 0 : index
    %87 = vector.load %arg5[%c1_44, %c0_45, %c0_46] : memref<3x1x32xf32, #tpu.memory_space<vmem>>, vector<1x1x32xf32>
    %88 = vector.shape_cast %87 : vector<1x1x32xf32> to vector<1x32xf32>
    %cst_47 = arith.constant 9.99999974E-6 : f32
    %89 = vector.broadcast %cst_47 : f32 to vector<64x1xf32>
    %90 = arith.addf %86, %89 : vector<64x1xf32>
    %91 = math.rsqrt %90 : vector<64x1xf32>
    %92 = vector.broadcast %88 : vector<1x32xf32> to vector<64x32xf32>
    %93 = vector.broadcast %91 : vector<64x1xf32> to vector<64x32xf32>
    %94 = arith.mulf %92, %93 : vector<64x32xf32>
    %95 = arith.mulf %73, %94 : vector<64x32xf32>
    %c1_48 = arith.constant 1 : index
    %c0_49 = arith.constant 0 : index
    %c0_50 = arith.constant 0 : index
    %96 = vector.load %arg6[%c1_48, %c0_49, %c0_50] : memref<3x1x32xf32, #tpu.memory_space<vmem>>, vector<1x1x32xf32>
    %97 = vector.shape_cast %96 : vector<1x1x32xf32> to vector<1x32xf32>
    %98 = vector.broadcast %77 : vector<64x1xf32> to vector<64x32xf32>
    %99 = arith.mulf %98, %94 : vector<64x32xf32>
    %100 = vector.broadcast %97 : vector<1x32xf32> to vector<64x32xf32>
    %101 = arith.subf %100, %99 : vector<64x32xf32>
    %102 = arith.addf %95, %101 : vector<64x32xf32>
    %cst_51 = arith.constant 0.000000e+00 : f32
    %103 = vector.broadcast %cst_51 : f32 to vector<64x32xf32>
    %104 = arith.maximumf %102, %103 : vector<64x32xf32>
    %c1_52 = arith.constant 1 : index
    %c0_53 = arith.constant 0 : index
    %c0_54 = arith.constant 0 : index
    %105 = vector.load %arg7[%c1_52, %c0_53, %c0_54] : memref<3x32x16xf32, #tpu.memory_space<vmem>>, vector<1x32x16xf32>
    %106 = vector.shape_cast %105 : vector<1x32x16xf32> to vector<32x16xf32>
    %cst_55 = arith.constant dense<0.000000e+00> : vector<64x16xf32>
    %107 = tpu.matmul %104, %106, %cst_55 {dimension_numbers = #tpu.dot_dimension_numbers<[1], [0], [0], [1], [0, 0, 1, 1], [], []>} : vector<64x32xf32>, vector<32x16xf32>, vector<64x16xf32> -> vector<64x16xf32>
    %c1_56 = arith.constant 1 : index
    %c0_57 = arith.constant 0 : index
    %c0_58 = arith.constant 0 : index
    %108 = vector.load %arg8[%c1_56, %c0_57, %c0_58] : memref<3x1x16xf32, #tpu.memory_space<vmem>>, vector<1x1x16xf32>
    %109 = vector.shape_cast %108 : vector<1x1x16xf32> to vector<1x16xf32>
    %110 = vector.broadcast %109 : vector<1x16xf32> to vector<64x16xf32>
    %111 = arith.addf %107, %110 : vector<64x16xf32>
    %112 = vector.shape_cast %111 : vector<64x16xf32> to vector<8x8x16xf32>
    %cst_59 = arith.constant -2.000000e+09 : f32
    %113 = vector.shape_cast %4 : vector<8x8x1xi1> to vector<8x8x1xi1>
    %114 = vector.broadcast %113 : vector<8x8x1xi1> to vector<8x8x16xi1>
    %115 = vector.broadcast %cst_59 : f32 to vector<8x8x16xf32>
    %116 = arith.select %114, %112, %115 : vector<8x8x16xi1>, vector<8x8x16xf32>
    %cst_60 = arith.constant dense<0xFF800000> : vector<8x16xf32>
    %117 = vector.multi_reduction <maximumf>, %116, %cst_60 [1] : vector<8x8x16xf32> to vector<8x16xf32>
    %c2 = arith.constant 2 : index
    %c0_61 = arith.constant 0 : index
    %c0_62 = arith.constant 0 : index
    %118 = vector.load %arg3[%c2, %c0_61, %c0_62] : memref<3x32x32xf32, #tpu.memory_space<vmem>>, vector<1x32x32xf32>
    %119 = vector.shape_cast %118 : vector<1x32x32xf32> to vector<32x32xf32>
    %120 = vector.extract_strided_slice %119 {offsets = [16, 0], sizes = [16, 32], strides = [1, 1]} : vector<32x32xf32> to vector<16x32xf32>
    %cst_63 = arith.constant dense<0.000000e+00> : vector<64x32xf32>
    %121 = tpu.matmul %111, %120, %cst_63 {dimension_numbers = #tpu.dot_dimension_numbers<[1], [0], [0], [1], [0, 0, 1, 1], [], []>} : vector<64x16xf32>, vector<16x32xf32>, vector<64x32xf32> -> vector<64x32xf32>
    %122 = vector.extract_strided_slice %119 {offsets = [0, 0], sizes = [16, 32], strides = [1, 1]} : vector<32x32xf32> to vector<16x32xf32>
    %cst_64 = arith.constant dense<0.000000e+00> : vector<8x32xf32>
    %123 = tpu.matmul %117, %122, %cst_64 {dimension_numbers = #tpu.dot_dimension_numbers<[1], [0], [0], [1], [0, 0, 1, 1], [], []>} : vector<8x16xf32>, vector<16x32xf32>, vector<8x32xf32> -> vector<8x32xf32>
    %124 = vector.shape_cast %121 : vector<64x32xf32> to vector<8x8x32xf32>
    %125 = vector.shape_cast %123 : vector<8x32xf32> to vector<8x1x32xf32>
    %126 = vector.broadcast %125 : vector<8x1x32xf32> to vector<8x8x32xf32>
    %127 = arith.addf %124, %126 : vector<8x8x32xf32>
    %c2_65 = arith.constant 2 : index
    %c0_66 = arith.constant 0 : index
    %c0_67 = arith.constant 0 : index
    %128 = vector.load %arg4[%c2_65, %c0_66, %c0_67] : memref<3x1x32xf32, #tpu.memory_space<vmem>>, vector<1x1x32xf32>
    %129 = vector.shape_cast %128 : vector<1x1x32xf32> to vector<1x32xf32>
    %130 = vector.shape_cast %129 : vector<1x32xf32> to vector<1x1x32xf32>
    %131 = vector.broadcast %130 : vector<1x1x32xf32> to vector<8x8x32xf32>
    %132 = arith.addf %127, %131 : vector<8x8x32xf32>
    %133 = vector.shape_cast %132 : vector<8x8x32xf32> to vector<64x32xf32>
    %cst_68 = arith.constant dense<0.000000e+00> : vector<64xf32>
    %134 = vector.multi_reduction <add>, %133, %cst_68 [1] : vector<64x32xf32> to vector<64xf32>
    %135 = vector.shape_cast %134 : vector<64xf32> to vector<64x1xf32>
    %cst_69 = arith.constant 3.200000e+01 : f32
    %136 = vector.broadcast %cst_69 : f32 to vector<64x1xf32>
    %137 = arith.divf %135, %136 : vector<64x1xf32>
    %138 = arith.mulf %133, %133 : vector<64x32xf32>
    %cst_70 = arith.constant dense<0.000000e+00> : vector<64xf32>
    %139 = vector.multi_reduction <add>, %138, %cst_70 [1] : vector<64x32xf32> to vector<64xf32>
    %140 = vector.shape_cast %139 : vector<64xf32> to vector<64x1xf32>
    %cst_71 = arith.constant 3.200000e+01 : f32
    %141 = vector.broadcast %cst_71 : f32 to vector<64x1xf32>
    %142 = arith.divf %140, %141 : vector<64x1xf32>
    %143 = arith.mulf %137, %137 : vector<64x1xf32>
    %144 = arith.subf %142, %143 : vector<64x1xf32>
    %cst_72 = arith.constant 0.000000e+00 : f32
    %145 = vector.broadcast %cst_72 : f32 to vector<64x1xf32>
    %146 = arith.maximumf %144, %145 : vector<64x1xf32>
    %c2_73 = arith.constant 2 : index
    %c0_74 = arith.constant 0 : index
    %c0_75 = arith.constant 0 : index
    %147 = vector.load %arg5[%c2_73, %c0_74, %c0_75] : memref<3x1x32xf32, #tpu.memory_space<vmem>>, vector<1x1x32xf32>
    %148 = vector.shape_cast %147 : vector<1x1x32xf32> to vector<1x32xf32>
    %cst_76 = arith.constant 9.99999974E-6 : f32
    %149 = vector.broadcast %cst_76 : f32 to vector<64x1xf32>
    %150 = arith.addf %146, %149 : vector<64x1xf32>
    %151 = math.rsqrt %150 : vector<64x1xf32>
    %152 = vector.broadcast %148 : vector<1x32xf32> to vector<64x32xf32>
    %153 = vector.broadcast %151 : vector<64x1xf32> to vector<64x32xf32>
    %154 = arith.mulf %152, %153 : vector<64x32xf32>
    %155 = arith.mulf %133, %154 : vector<64x32xf32>
    %c2_77 = arith.constant 2 : index
    %c0_78 = arith.constant 0 : index
    %c0_79 = arith.constant 0 : index
    %156 = vector.load %arg6[%c2_77, %c0_78, %c0_79] : memref<3x1x32xf32, #tpu.memory_space<vmem>>, vector<1x1x32xf32>
    %157 = vector.shape_cast %156 : vector<1x1x32xf32> to vector<1x32xf32>
    %158 = vector.broadcast %137 : vector<64x1xf32> to vector<64x32xf32>
    %159 = arith.mulf %158, %154 : vector<64x32xf32>
    %160 = vector.broadcast %157 : vector<1x32xf32> to vector<64x32xf32>
    %161 = arith.subf %160, %159 : vector<64x32xf32>
    %162 = arith.addf %155, %161 : vector<64x32xf32>
    %cst_80 = arith.constant 0.000000e+00 : f32
    %163 = vector.broadcast %cst_80 : f32 to vector<64x32xf32>
    %164 = arith.maximumf %162, %163 : vector<64x32xf32>
    %c2_81 = arith.constant 2 : index
    %c0_82 = arith.constant 0 : index
    %c0_83 = arith.constant 0 : index
    %165 = vector.load %arg7[%c2_81, %c0_82, %c0_83] : memref<3x32x16xf32, #tpu.memory_space<vmem>>, vector<1x32x16xf32>
    %166 = vector.shape_cast %165 : vector<1x32x16xf32> to vector<32x16xf32>
    %cst_84 = arith.constant dense<0.000000e+00> : vector<64x16xf32>
    %167 = tpu.matmul %164, %166, %cst_84 {dimension_numbers = #tpu.dot_dimension_numbers<[1], [0], [0], [1], [0, 0, 1, 1], [], []>} : vector<64x32xf32>, vector<32x16xf32>, vector<64x16xf32> -> vector<64x16xf32>
    %c2_85 = arith.constant 2 : index
    %c0_86 = arith.constant 0 : index
    %c0_87 = arith.constant 0 : index
    %168 = vector.load %arg8[%c2_85, %c0_86, %c0_87] : memref<3x1x16xf32, #tpu.memory_space<vmem>>, vector<1x1x16xf32>
    %169 = vector.shape_cast %168 : vector<1x1x16xf32> to vector<1x16xf32>
    %170 = vector.broadcast %169 : vector<1x16xf32> to vector<64x16xf32>
    %171 = arith.addf %167, %170 : vector<64x16xf32>
    %172 = vector.shape_cast %171 : vector<64x16xf32> to vector<8x8x16xf32>
    %cst_88 = arith.constant -2.000000e+09 : f32
    %173 = vector.shape_cast %4 : vector<8x8x1xi1> to vector<8x8x1xi1>
    %174 = vector.broadcast %173 : vector<8x8x1xi1> to vector<8x8x16xi1>
    %175 = vector.broadcast %cst_88 : f32 to vector<8x8x16xf32>
    %176 = arith.select %174, %172, %175 : vector<8x8x16xi1>, vector<8x8x16xf32>
    %cst_89 = arith.constant dense<0xFF800000> : vector<8x16xf32>
    %177 = vector.multi_reduction <maximumf>, %176, %cst_89 [1] : vector<8x8x16xf32> to vector<8x16xf32>
    %c8_i32 = arith.constant 8 : i32
    %178 = vector.broadcast %c8_i32 : i32 to vector<8x1xi32>
    %179 = arith.cmpi slt, %0, %178 : vector<8x1xi32>
    %cst_90 = arith.constant -2.000000e+09 : f32
    %180 = vector.broadcast %cst_90 : f32 to vector<8x16xf32>
    %181 = arith.maximumf %177, %180 : vector<8x16xf32>
    %182 = vector.shape_cast %179 : vector<8x1xi1> to vector<8x1xi1>
    %183 = vector.broadcast %182 : vector<8x1xi1> to vector<8x16xi1>
    %184 = arith.select %183, %181, %177 : vector<8x16xi1>, vector<8x16xf32>
    %c0_91 = arith.constant 0 : index
    %c0_92 = arith.constant 0 : index
    %185 = vector.load %arg9[%c0_91, %c0_92] : memref<8x32xf32, #tpu.memory_space<vmem>>, vector<8x16xf32>
    tpu.vector_store %arg9[%c0_91, %c0_92], %184 {strides = array<i32>} : memref<8x32xf32, #tpu.memory_space<vmem>>, vector<8x16xf32>,
    %c0_93 = arith.constant 0 : index
    %c16 = arith.constant 16 : index
    %186 = vector.load %arg9[%c0_93, %c16] : memref<8x32xf32, #tpu.memory_space<vmem>>, vector<8x16xf32>
    tpu.vector_store %arg9[%c0_93, %c16], %177 {strides = array<i32>} : memref<8x32xf32, #tpu.memory_space<vmem>>, vector<8x16xf32>,
    return
  }
  func.func @transform_0(%arg0: i32) -> (i32, i32, i32) {
    %c0_i32 = arith.constant 0 : i32
    %c0_i32_0 = arith.constant 0 : i32
    %c0_i32_1 = arith.constant 0 : i32
    return %arg0, %c0_i32, %c0_i32_0 : i32, i32, i32
  }
  func.func @transform_1(%arg0: i32) -> (i32, i32) {
    %c0_i32 = arith.constant 0 : i32
    %c0_i32_0 = arith.constant 0 : i32
    return %arg0, %c0_i32 : i32, i32
  }
  func.func @transform_2(%arg0: i32) -> (i32, i32, i32) {
    %c0_i32 = arith.constant 0 : i32
    %c0_i32_0 = arith.constant 0 : i32
    %c0_i32_1 = arith.constant 0 : i32
    %c0_i32_2 = arith.constant 0 : i32
    return %c0_i32, %c0_i32_0, %c0_i32_1 : i32, i32, i32
  }
  func.func @transform_3(%arg0: i32) -> (i32, i32, i32) {
    %c0_i32 = arith.constant 0 : i32
    %c0_i32_0 = arith.constant 0 : i32
    %c0_i32_1 = arith.constant 0 : i32
    %c0_i32_2 = arith.constant 0 : i32
    return %c0_i32, %c0_i32_0, %c0_i32_1 : i32, i32, i32
  }
  func.func @transform_4(%arg0: i32) -> (i32, i32, i32) {
    %c0_i32 = arith.constant 0 : i32
    %c0_i32_0 = arith.constant 0 : i32
    %c0_i32_1 = arith.constant 0 : i32
    %c0_i32_2 = arith.constant 0 : i32
    return %c0_i32, %c0_i32_0, %c0_i32_1 : i32, i32, i32
  }
  func.func @transform_5(%arg0: i32) -> (i32, i32, i32) {
    %c0_i32 = arith.constant 0 : i32
    %c0_i32_0 = arith.constant 0 : i32
    %c0_i32_1 = arith.constant 0 : i32
    %c0_i32_2 = arith.constant 0 : i32
    return %c0_i32, %c0_i32_0, %c0_i32_1 : i32, i32, i32
  }
  func.func @transform_6(%arg0: i32) -> (i32, i32, i32) {
    %c0_i32 = arith.constant 0 : i32
    %c0_i32_0 = arith.constant 0 : i32
    %c0_i32_1 = arith.constant 0 : i32
    %c0_i32_2 = arith.constant 0 : i32
    return %c0_i32, %c0_i32_0, %c0_i32_1 : i32, i32, i32
  }
  func.func @transform_7(%arg0: i32) -> (i32, i32, i32) {
    %c0_i32 = arith.constant 0 : i32
    %c0_i32_0 = arith.constant 0 : i32
    %c0_i32_1 = arith.constant 0 : i32
    %c0_i32_2 = arith.constant 0 : i32
    return %c0_i32, %c0_i32_0, %c0_i32_1 : i32, i32, i32
  }
  func.func @transform_8(%arg0: i32) -> (i32, i32) {
    %c0_i32 = arith.constant 0 : i32
    %c0_i32_0 = arith.constant 0 : i32
    return %arg0, %c0_i32 : i32, i32
  }
}

</mosaic_0001>

<llo_original>
// kernel: tpu_custom_call.1
$region0: #{tpu_custom_call.1}
  #allocation0 [shape = 'u32[]', space=smem, size = 0x4, offset = 0x4, fixed_abs, tag = 'smem constant byte address 0x4 - core index']
  #allocation1 [shape = 'u32[72,128]{1,0:T(1,128)}', space=vmem, size = 0x9000, scoped, tag = 'internal scratch']
  %s0 = inlined_call_operand.hbm [shape: f32[8,8,32], index: 0, kind: input, shape index: {}]
  %s1 = inlined_call_operand.vmem [shape: s32[8,1], index: 1, kind: input, shape index: {}]
  %s2 = inlined_call_operand.vmem [shape: f32[3,32,32], index: 2, kind: input, shape index: {}]
  %s3 = inlined_call_operand.vmem [shape: f32[3,1,32], index: 3, kind: input, shape index: {}]
  %s4 = inlined_call_operand.vmem [shape: f32[3,1,32], index: 4, kind: input, shape index: {}]
  %s5 = inlined_call_operand.vmem [shape: f32[3,1,32], index: 5, kind: input, shape index: {}]
  %s6 = inlined_call_operand.vmem [shape: f32[3,32,16], index: 6, kind: input, shape index: {}]
  %s7 = inlined_call_operand.vmem [shape: f32[3,1,16], index: 7, kind: input, shape index: {}]
  %s8 = inlined_call_operand.hbm [shape: f32[8,32], index: 8, kind: output, shape index: {}]
  %s9 = sld [smem:[#allocation0]]
  $region46: #{tpu_custom_call.1} parent=0
    _
  %s11 = ssub.s32 1, %s9
  %s12 = scalar_select 0, %s11, %s9
  $region1: #{tpu_custom_call.1} parent=0
    #allocation2 [shape = 'u8[32768]{0}', space=vmem, size = 0x8000, scoped, tag = 'input window, operand 0, single buffered']
    #allocation3 [shape = 's32[1]{0}', space=sflag, size = 0x4, scoped, tag = 'scoped memory for tpu_custom_call.1']
    #allocation4 [shape = 's32[1]{0}', space=sflag, size = 0x4, scoped, tag = 'scoped memory for tpu_custom_call.1']
    #allocation5 [shape = 'u8[4096]{0}', space=vmem, size = 0x1000, scoped, tag = 'output window, operand 0, single buffered']
    %13 = vsyncpa [#allocation3], 0
    %14 = vsyncpa [#allocation4], 0
    // Predicated region
    $region2: #{tpu_custom_call.1} parent=1 // pred_check
      _
    $region3: #{tpu_custom_call.1} parent=1 // pred_check_branch
      %16 = sbr.rel (0) target = $region5
    $region4: #{tpu_custom_call.1} parent=1 // pred_region
      %18 = vsyncadd [#allocation3], 0
      %s19 = sshll.u32 %s0, 4
      %s20 = int_to_ptr.hbm [resolvable:$true] %s19
      %s21 = sshll.u32 [#allocation2], 4
      %s22 = int_to_ptr.vmem [resolvable:$true] %s21
      %27 = dma.hbm_to_vmem [thread:$0]  %s20, 1024, %s22, [#allocation3], 128, 128, 8
    $region5: #{tpu_custom_call.1} parent=1 // pred_fallthru
      _
    // Predicated region
    $region6: #{tpu_custom_call.1} parent=1 // pred_check
      _
    $region7: #{tpu_custom_call.1} parent=1 // pred_check_branch
      %29 = sbr.rel (0) target = $region9
    $region8: #{tpu_custom_call.1} parent=1 // pred_region
      _
    $region9: #{tpu_custom_call.1} parent=1 // pred_fallthru
      _
    // Predicated region
    $region10: #{tpu_custom_call.1} parent=1 // pred_check
      _
    $region11: #{tpu_custom_call.1} parent=1 // pred_check_branch
      %31 = sbr.rel (0) target = $region13
    $region12: #{tpu_custom_call.1} parent=1 // pred_region
      _
    $region13: #{tpu_custom_call.1} parent=1 // pred_fallthru
      _
    // Predicated region
    $region14: #{tpu_custom_call.1} parent=1 // pred_check
      _
    $region15: #{tpu_custom_call.1} parent=1 // pred_check_branch
      %33 = sbr.rel (0) target = $region17
    $region16: #{tpu_custom_call.1} parent=1 // pred_region
      _
    $region17: #{tpu_custom_call.1} parent=1 // pred_fallthru
      _
    // Predicated region
    $region18: #{tpu_custom_call.1} parent=1 // pred_check
      _
    $region19: #{tpu_custom_call.1} parent=1 // pred_check_branch
      %35 = sbr.rel (0) target = $region21
    $region20: #{tpu_custom_call.1} parent=1 // pred_region
      _
    $region21: #{tpu_custom_call.1} parent=1 // pred_fallthru
      _
    // Predicated region
    $region22: #{tpu_custom_call.1} parent=1 // pred_check
      _
    $region23: #{tpu_custom_call.1} parent=1 // pred_check_branch
      %37 = sbr.rel (0) target = $region25
    $region24: #{tpu_custom_call.1} parent=1 // pred_region
      _
    $region25: #{tpu_custom_call.1} parent=1 // pred_fallthru
      _
    // Predicated region
    $region26: #{tpu_custom_call.1} parent=1 // pred_check
      _
    $region27: #{tpu_custom_call.1} parent=1 // pred_check_branch
      %39 = sbr.rel (0) target = $region29
    $region28: #{tpu_custom_call.1} parent=1 // pred_region
      _
    $region29: #{tpu_custom_call.1} parent=1 // pred_fallthru
      _
    // Predicated region
    $region30: #{tpu_custom_call.1} parent=1 // pred_check
      _
    $region31: #{tpu_custom_call.1} parent=1 // pred_check_branch
      %41 = sbr.rel (0) target = $region33
    $region32: #{tpu_custom_call.1} parent=1 // pred_region
      _
    $region33: #{tpu_custom_call.1} parent=1 // pred_fallthru
      _
    // Predicated region
    $region34: #{tpu_custom_call.1} parent=1 // pred_check
      _
    $region35: #{tpu_custom_call.1} parent=1 // pred_check_branch
      %43 = sbr.rel (0) target = $region37
    $region36: #{tpu_custom_call.1} parent=1 // pred_region
      %45 = dma.done [#allocation3], 1024
    $region37: #{tpu_custom_call.1} parent=1 // pred_fallthru
      _
    %v46 = vld [vmem:[%s1] sm:$0xff]
    %v47 = vlaneseq
    %v48 = vshrl.u32 %v47, 7
    %v49 = vrot.slane %v46, 1
    %v50 = vrot.slane %v46, 2
    %v51 = vrot.slane %v46, 3
    %v52 = vrot.slane %v46, 4
    %v53 = vrot.slane %v46, 5
    %v54 = vrot.slane %v46, 6
    %v55 = vrot.slane %v46, 7
    %v56 = vperm.slane %v46, 0
    %v57 = vperm.slane %v49, 0
    %v58 = vperm.slane %v50, 0
    %v59 = vperm.slane %v51, 0
    %v60 = vperm.slane %v52, 0
    %v61 = vperm.slane %v53, 0
    %v62 = vperm.slane %v54, 0
    %v63 = vperm.slane %v55, 0
    %vm64 = vcmp.lt.s32.totalorder %v48, %v56
    %vm65 = vcmp.lt.s32.totalorder %v48, %v57
    %vm66 = vcmp.lt.s32.totalorder %v48, %v58
    %vm67 = vcmp.lt.s32.totalorder %v48, %v59
    %vm68 = vcmp.lt.s32.totalorder %v48, %v60
    %vm69 = vcmp.lt.s32.totalorder %v48, %v61
    %vm70 = vcmp.lt.s32.totalorder %v48, %v62
    %vm71 = vcmp.lt.s32.totalorder %v48, %v63
    %v72 = vld [vmem:[#allocation2] sm:$0xff]
    %v73 = vld [vmem:[#allocation2 + $0x8] sm:$0xff]
    %v74 = vld [vmem:[#allocation2 + $0x10] sm:$0xff]
    %v75 = vld [vmem:[#allocation2 + $0x18] sm:$0xff]
    %v76 = vld [vmem:[#allocation2 + $0x20] sm:$0xff]
    %v77 = vld [vmem:[#allocation2 + $0x28] sm:$0xff]
    %v78 = vld [vmem:[#allocation2 + $0x30] sm:$0xff]
    %v79 = vld [vmem:[#allocation2 + $0x38] sm:$0xff]
    %v80 = vld [vmem:[%s2] sm:$0xff]
    %v81 = vld [vmem:[%s2 + $0x8] sm:$0xff]
    %v82 = vld [vmem:[%s2 + $0x10] sm:$0xff]
    %v83 = vld [vmem:[%s2 + $0x18] sm:$0xff]
    %v84 = vld [vmem:[%s3] sm:$0x1]
    %v86 = vperm.slane %v84, 0
    %vm88 = vcmask 261120
    %v90 = vsel %vm88, %v72, 0
    %v93 = vsel %vm88, %v73, 0
    %v96 = vsel %vm88, %v74, 0
    %v99 = vsel %vm88, %v75, 0
    %v102 = vsel %vm88, %v76, 0
    %v105 = vsel %vm88, %v77, 0
    %v108 = vsel %vm88, %v78, 0
    %v111 = vsel %vm88, %v79, 0
    %113 = vmatpush.msra.mxu0 0.0
    %114 = vmatpush.msra.mxu0 0.0
    %115 = vmatpush.msra.mxu0 0.0
    %116 = vmatpush.msra.mxu0 0.0
    %117 = vmatpush.msra.mxu0 0.0
    %118 = vmatpush.msra.mxu0 0.0
    %119 = vmatpush.msra.mxu0 0.0
    %120 = vmatpush.msra.mxu0 0.0
    %121 = vmatpush.msra.mxu0 0.0
    %122 = vmatpush.msra.mxu0 0.0
    %123 = vmatpush.msra.mxu0 0.0
    %124 = vmatpush.msra.mxu0 0.0
    %125 = vmatpush.msra.mxu0 %v83
    %126 = vmatpush.msra.mxu0 %v82
    %127 = vmatpush.msra.mxu0 %v81
    %128 = vmatpush.msra.mxu0 %v80
    %129 = vmatmul.f32.gmra.mxu0 %v90
    %v130 = vpop.f32.mrf.mxu0
    %v131 = vadd.f32 %v86, %v130
    %132 = vmatmul.f32.gmra.mxu0 %v93
    %v133 = vpop.f32.mrf.mxu0
    %v134 = vadd.f32 %v86, %v133
    %135 = vmatmul.f32.gmra.mxu0 %v96
    %v136 = vpop.f32.mrf.mxu0
    %v137 = vadd.f32 %v86, %v136
    %138 = vmatmul.f32.gmra.mxu0 %v99
    %v139 = vpop.f32.mrf.mxu0
    %v140 = vadd.f32 %v86, %v139
    %141 = vmatmul.f32.gmra.mxu0 %v102
    %v142 = vpop.f32.mrf.mxu0
    %v143 = vadd.f32 %v86, %v142
    %144 = vmatmul.f32.gmra.mxu0 %v105
    %v145 = vpop.f32.mrf.mxu0
    %v146 = vadd.f32 %v86, %v145
    %147 = vmatmul.f32.gmra.mxu0 %v108
    %v148 = vpop.f32.mrf.mxu0
    %v149 = vadd.f32 %v86, %v148
    %150 = vmatmul.f32.gmra.mxu0 %v111
    %v151 = vpop.f32.mrf.mxu0
    %v152 = vadd.f32 %v86, %v151
    %153 = vdwg.mxu0
    %v154 = vsel %vm88, %v131, 0.0
    %155 = vadd.xlane.f32.xlu0 %v154
    %v156 = vpop.xlane.xlu0 %155
    %v157 = vsel %vm88, %v134, 0.0
    %158 = vadd.xlane.f32.xlu0 %v157
    %v159 = vpop.xlane.xlu0 %158
    %v160 = vsel %vm88, %v137, 0.0
    %161 = vadd.xlane.f32.xlu0 %v160
    %v162 = vpop.xlane.xlu0 %161
    %v163 = vsel %vm88, %v140, 0.0
    %164 = vadd.xlane.f32.xlu0 %v163
    %v165 = vpop.xlane.xlu0 %164
    %v166 = vsel %vm88, %v143, 0.0
    %167 = vadd.xlane.f32.xlu0 %v166
    %v168 = vpop.xlane.xlu0 %167
    %v169 = vsel %vm88, %v146, 0.0
    %170 = vadd.xlane.f32.xlu0 %v169
    %v171 = vpop.xlane.xlu0 %170
    %v172 = vsel %vm88, %v149, 0.0
    %173 = vadd.xlane.f32.xlu0 %v172
    %v174 = vpop.xlane.xlu0 %173
    %v175 = vsel %vm88, %v152, 0.0
    %176 = vadd.xlane.f32.xlu0 %v175
    %v177 = vpop.xlane.xlu0 %176
    %v178 = vrcp.pop 32.0
    %v179 = vmul.f32 32.0, %v178
    %v180 = vsub.f32 1.0, %v179
    %v181 = vmul.f32 %v178, %v180
    %v182 = vadd.f32 %v178, %v181
    %vm183 = vweird.f32 %v178
    %v184 = vsel %vm183, %v178, %v182
    %v185 = vmul.f32 %v156, %v184
    %v186 = vmul.f32 %v159, %v184
    %v187 = vmul.f32 %v162, %v184
    %v188 = vmul.f32 %v165, %v184
    %v189 = vmul.f32 %v168, %v184
    %v190 = vmul.f32 %v171, %v184
    %v191 = vmul.f32 %v174, %v184
    %v192 = vmul.f32 %v177, %v184
    %v193 = vmul.f32 %v131, %v131
    %v194 = vmul.f32 %v134, %v134
    %v195 = vmul.f32 %v137, %v137
    %v196 = vmul.f32 %v140, %v140
    %v197 = vmul.f32 %v143, %v143
    %v198 = vmul.f32 %v146, %v146
    %v199 = vmul.f32 %v149, %v149
    %v200 = vmul.f32 %v152, %v152
    %v201 = vsel %vm88, %v193, 0.0
    %202 = vadd.xlane.f32.xlu0 %v201
    %v203 = vpop.xlane.xlu0 %202
    %v204 = vsel %vm88, %v194, 0.0
    %205 = vadd.xlane.f32.xlu0 %v204
    %v206 = vpop.xlane.xlu0 %205
    %v207 = vsel %vm88, %v195, 0.0
    %208 = vadd.xlane.f32.xlu0 %v207
    %v209 = vpop.xlane.xlu0 %208
    %v210 = vsel %vm88, %v196, 0.0
    %211 = vadd.xlane.f32.xlu0 %v210
    %v212 = vpop.xlane.xlu0 %211
    %v213 = vsel %vm88, %v197, 0.0
    %214 = vadd.xlane.f32.xlu0 %v213
    %v215 = vpop.xlane.xlu0 %214
    %v216 = vsel %vm88, %v198, 0.0
    %217 = vadd.xlane.f32.xlu0 %v216
    %v218 = vpop.xlane.xlu0 %217
    %v219 = vsel %vm88, %v199, 0.0
    %220 = vadd.xlane.f32.xlu0 %v219
    %v221 = vpop.xlane.xlu0 %220
    %v222 = vsel %vm88, %v200, 0.0
    %223 = vadd.xlane.f32.xlu0 %v222
    %v224 = vpop.xlane.xlu0 %223
    %v225 = vmul.f32 %v203, %v184
    %v226 = vmul.f32 %v206, %v184
    %v227 = vmul.f32 %v209, %v184
    %v228 = vmul.f32 %v212, %v184
    %v229 = vmul.f32 %v215, %v184
    %v230 = vmul.f32 %v218, %v184
    %v231 = vmul.f32 %v221, %v184
    %v232 = vmul.f32 %v224, %v184
    %v233 = vmul.f32 %v185, %v185
    %v234 = vmul.f32 %v186, %v186
    %v235 = vmul.f32 %v187, %v187
    %v236 = vmul.f32 %v188, %v188
    %v237 = vmul.f32 %v189, %v189
    %v238 = vmul.f32 %v190, %v190
    %v239 = vmul.f32 %v191, %v191
    %v240 = vmul.f32 %v192, %v192
    %v241 = vsub.f32 %v225, %v233
    %v242 = vsub.f32 %v226, %v234
    %v243 = vsub.f32 %v227, %v235
    %v244 = vsub.f32 %v228, %v236
    %v245 = vsub.f32 %v229, %v237
    %v246 = vsub.f32 %v230, %v238
    %v247 = vsub.f32 %v231, %v239
    %v248 = vsub.f32 %v232, %v240
    %v249 = vmax.f32 %v241, 0.0
    %v250 = vmax.f32 %v242, 0.0
    %v251 = vmax.f32 %v243, 0.0
    %v252 = vmax.f32 %v244, 0.0
    %v253 = vmax.f32 %v245, 0.0
    %v254 = vmax.f32 %v246, 0.0
    %v255 = vmax.f32 %v247, 0.0
    %v256 = vmax.f32 %v248, 0.0
    %v257 = vld [vmem:[%s4] sm:$0x1]
    %v258 = vadd.f32 %v249, 1e-05
    %v259 = vadd.f32 %v250, 1e-05
    %v260 = vadd.f32 %v251, 1e-05
    %v261 = vadd.f32 %v252, 1e-05
    %v262 = vadd.f32 %v253, 1e-05
    %v263 = vadd.f32 %v254, 1e-05
    %v264 = vadd.f32 %v255, 1e-05
    %v265 = vadd.f32 %v256, 1e-05
    %v266 = vrsqrt.pop %v258
    %v267 = vmul.f32 %v266, %v258
    %v268 = vmul.f32 %v267, %v266
    %v269 = vmul.f32 0.5, %v268
    %v270 = vsub.f32 1.5, %v269
    %v271 = vmul.f32 %v266, %v270
    %vm272 = vweird.f32 %v258
    %vm273 = vweird.f32 %v266
    %vm274 = vmor %vm272, %vm273
    %v275 = vsel %vm274, %v266, %v271
    %v276 = vrsqrt.pop %v259
    %v277 = vmul.f32 %v276, %v259
    %v278 = vmul.f32 %v277, %v276
    %v279 = vmul.f32 0.5, %v278
    %v280 = vsub.f32 1.5, %v279
    %v281 = vmul.f32 %v276, %v280
    %vm282 = vweird.f32 %v259
    %vm283 = vweird.f32 %v276
    %vm284 = vmor %vm282, %vm283
    %v285 = vsel %vm284, %v276, %v281
    %v286 = vrsqrt.pop %v260
    %v287 = vmul.f32 %v286, %v260
    %v288 = vmul.f32 %v287, %v286
    %v289 = vmul.f32 0.5, %v288
    %v290 = vsub.f32 1.5, %v289
    %v291 = vmul.f32 %v286, %v290
    %vm292 = vweird.f32 %v260
    %vm293 = vweird.f32 %v286
    %vm294 = vmor %vm292, %vm293
    %v295 = vsel %vm294, %v286, %v291
    %v296 = vrsqrt.pop %v261
    %v297 = vmul.f32 %v296, %v261
    %v298 = vmul.f32 %v297, %v296
    %v299 = vmul.f32 0.5, %v298
    %v300 = vsub.f32 1.5, %v299
    %v301 = vmul.f32 %v296, %v300
    %vm302 = vweird.f32 %v261
    %vm303 = vweird.f32 %v296
    %vm304 = vmor %vm302, %vm303
    %v305 = vsel %vm304, %v296, %v301
    %v306 = vrsqrt.pop %v262
    %v307 = vmul.f32 %v306, %v262
    %v308 = vmul.f32 %v307, %v306
    %v309 = vmul.f32 0.5, %v308
    %v310 = vsub.f32 1.5, %v309
    %v311 = vmul.f32 %v306, %v310
    %vm312 = vweird.f32 %v262
    %vm313 = vweird.f32 %v306
    %vm314 = vmor %vm312, %vm313
    %v315 = vsel %vm314, %v306, %v311
    %v316 = vrsqrt.pop %v263
    %v317 = vmul.f32 %v316, %v263
    %v318 = vmul.f32 %v317, %v316
    %v319 = vmul.f32 0.5, %v318
    %v320 = vsub.f32 1.5, %v319
    %v321 = vmul.f32 %v316, %v320
    %vm322 = vweird.f32 %v263
    %vm323 = vweird.f32 %v316
    %vm324 = vmor %vm322, %vm323
    %v325 = vsel %vm324, %v316, %v321
    %v326 = vrsqrt.pop %v264
    %v327 = vmul.f32 %v326, %v264
    %v328 = vmul.f32 %v327, %v326
    %v329 = vmul.f32 0.5, %v328
    %v330 = vsub.f32 1.5, %v329
    %v331 = vmul.f32 %v326, %v330
    %vm332 = vweird.f32 %v264
    %vm333 = vweird.f32 %v326
    %vm334 = vmor %vm332, %vm333
    %v335 = vsel %vm334, %v326, %v331
    %v336 = vrsqrt.pop %v265
    %v337 = vmul.f32 %v336, %v265
    %v338 = vmul.f32 %v337, %v336
    %v339 = vmul.f32 0.5, %v338
    %v340 = vsub.f32 1.5, %v339
    %v341 = vmul.f32 %v336, %v340
    %vm342 = vweird.f32 %v265
    %vm343 = vweird.f32 %v336
    %vm344 = vmor %vm342, %vm343
    %v345 = vsel %vm344, %v336, %v341
    %v347 = vperm.slane %v257, 0
    %v349 = vmul.f32 %v347, %v275
    %v350 = vmul.f32 %v347, %v285
    %v351 = vmul.f32 %v347, %v295
    %v352 = vmul.f32 %v347, %v305
    %v353 = vmul.f32 %v347, %v315
    %v354 = vmul.f32 %v347, %v325
    %v355 = vmul.f32 %v347, %v335
    %v356 = vmul.f32 %v347, %v345
    %v357 = vmul.f32 %v131, %v349
    %v358 = vmul.f32 %v134, %v350
    %v359 = vmul.f32 %v137, %v351
    %v360 = vmul.f32 %v140, %v352
    %v361 = vmul.f32 %v143, %v353
    %v362 = vmul.f32 %v146, %v354
    %v363 = vmul.f32 %v149, %v355
    %v364 = vmul.f32 %v152, %v356
    %v365 = vld [vmem:[%s5] sm:$0x1]
    %v366 = vmul.f32 %v185, %v349
    %v367 = vmul.f32 %v186, %v350
    %v368 = vmul.f32 %v187, %v351
    %v369 = vmul.f32 %v188, %v352
    %v370 = vmul.f32 %v189, %v353
    %v371 = vmul.f32 %v190, %v354
    %v372 = vmul.f32 %v191, %v355
    %v373 = vmul.f32 %v192, %v356
    %v375 = vperm.slane %v365, 0
    %v377 = vsub.f32 %v375, %v366
    %v378 = vsub.f32 %v375, %v367
    %v379 = vsub.f32 %v375, %v368
    %v380 = vsub.f32 %v375, %v369
    %v381 = vsub.f32 %v375, %v370
    %v382 = vsub.f32 %v375, %v371
    %v383 = vsub.f32 %v375, %v372
    %v384 = vsub.f32 %v375, %v373
    %v385 = vadd.f32 %v357, %v377
    %v386 = vadd.f32 %v358, %v378
    %v387 = vadd.f32 %v359, %v379
    %v388 = vadd.f32 %v360, %v380
    %v389 = vadd.f32 %v361, %v381
    %v390 = vadd.f32 %v362, %v382
    %v391 = vadd.f32 %v363, %v383
    %v392 = vadd.f32 %v364, %v384
    %v393 = vmax.f32 %v385, 0.0
    %v394 = vmax.f32 %v386, 0.0
    %v395 = vmax.f32 %v387, 0.0
    %v396 = vmax.f32 %v388, 0.0
    %v397 = vmax.f32 %v389, 0.0
    %v398 = vmax.f32 %v390, 0.0
    %v399 = vmax.f32 %v391, 0.0
    %v400 = vmax.f32 %v392, 0.0
    %v401 = vld [vmem:[%s6] sm:$0xff]
    %v402 = vld [vmem:[%s6 + $0x8] sm:$0xff]
    %v403 = vld [vmem:[%s6 + $0x10] sm:$0xff]
    %v404 = vld [vmem:[%s6 + $0x18] sm:$0xff]
    %v405 = vld [vmem:[%s7] sm:$0x1]
    %v407 = vperm.slane %v405, 0
    %v410 = vsel %vm88, %v393, 0
    %v413 = vsel %vm88, %v394, 0
    %v416 = vsel %vm88, %v395, 0
    %v419 = vsel %vm88, %v396, 0
    %v422 = vsel %vm88, %v397, 0
    %v425 = vsel %vm88, %v398, 0
    %v428 = vsel %vm88, %v399, 0
    %v431 = vsel %vm88, %v400, 0
    %433 = vmatpush.msra.mxu0 0.0
    %434 = vmatpush.msra.mxu0 0.0
    %435 = vmatpush.msra.mxu0 0.0
    %436 = vmatpush.msra.mxu0 0.0
    %437 = vmatpush.msra.mxu0 0.0
    %438 = vmatpush.msra.mxu0 0.0
    %439 = vmatpush.msra.mxu0 0.0
    %440 = vmatpush.msra.mxu0 0.0
    %441 = vmatpush.msra.mxu0 0.0
    %442 = vmatpush.msra.mxu0 0.0
    %443 = vmatpush.msra.mxu0 0.0
    %444 = vmatpush.msra.mxu0 0.0
    %445 = vmatpush.msra.mxu0 %v404
    %446 = vmatpush.msra.mxu0 %v403
    %447 = vmatpush.msra.mxu0 %v402
    %448 = vmatpush.msra.mxu0 %v401
    %449 = vmatmul.f32.gmra.mxu0 %v410
    %v450 = vpop.f32.mrf.mxu0
    %v451 = vadd.f32 %v407, %v450
    %452 = vmatmul.f32.gmra.mxu0 %v413
    %v453 = vpop.f32.mrf.mxu0
    %v454 = vadd.f32 %v407, %v453
    %455 = vmatmul.f32.gmra.mxu0 %v416
    %v456 = vpop.f32.mrf.mxu0
    %v457 = vadd.f32 %v407, %v456
    %458 = vmatmul.f32.gmra.mxu0 %v419
    %v459 = vpop.f32.mrf.mxu0
    %v460 = vadd.f32 %v407, %v459
    %461 = vmatmul.f32.gmra.mxu0 %v422
    %v462 = vpop.f32.mrf.mxu0
    %v463 = vadd.f32 %v407, %v462
    %464 = vmatmul.f32.gmra.mxu0 %v425
    %v465 = vpop.f32.mrf.mxu0
    %v466 = vadd.f32 %v407, %v465
    %467 = vmatmul.f32.gmra.mxu0 %v428
    %v468 = vpop.f32.mrf.mxu0
    %v469 = vadd.f32 %v407, %v468
    %470 = vmatmul.f32.gmra.mxu0 %v431
    %v471 = vpop.f32.mrf.mxu0
    %v472 = vadd.f32 %v407, %v471
    %473 = vdwg.mxu0
    %v474 = vsel %vm64, 1, 0
    %v475 = vsel %vm65, 1, 0
    %v476 = vsel %vm66, 1, 0
    %v477 = vsel %vm67, 1, 0
    %v478 = vsel %vm68, 1, 0
    %v479 = vsel %vm69, 1, 0
    %v480 = vsel %vm70, 1, 0
    %v481 = vsel %vm71, 1, 0
    %482 = vset.pattern.permute.xlu0 0
    %483 = vperm.xlu0 %482, %v474
    %v484 = vpop.permute.xlu0 %483
    %485 = vset.pattern.permute.xlu0 0
    %486 = vperm.xlu0 %485, %v475
    %v487 = vpop.permute.xlu0 %486
    %488 = vset.pattern.permute.xlu0 0
    %489 = vperm.xlu0 %488, %v476
    %v490 = vpop.permute.xlu0 %489
    %491 = vset.pattern.permute.xlu0 0
    %492 = vperm.xlu0 %491, %v477
    %v493 = vpop.permute.xlu0 %492
    %494 = vset.pattern.permute.xlu0 0
    %495 = vperm.xlu0 %494, %v478
    %v496 = vpop.permute.xlu0 %495
    %497 = vset.pattern.permute.xlu0 0
    %498 = vperm.xlu0 %497, %v479
    %v499 = vpop.permute.xlu0 %498
    %500 = vset.pattern.permute.xlu0 0
    %501 = vperm.xlu0 %500, %v480
    %v502 = vpop.permute.xlu0 %501
    %503 = vset.pattern.permute.xlu0 0
    %504 = vperm.xlu0 %503, %v481
    %v505 = vpop.permute.xlu0 %504
    %vm506 = vcmp.eq.s32.totalorder %v484, 1
    %vm507 = vcmp.eq.s32.totalorder %v487, 1
    %vm508 = vcmp.eq.s32.totalorder %v490, 1
    %vm509 = vcmp.eq.s32.totalorder %v493, 1
    %vm510 = vcmp.eq.s32.totalorder %v496, 1
    %vm511 = vcmp.eq.s32.totalorder %v499, 1
    %vm512 = vcmp.eq.s32.totalorder %v502, 1
    %vm513 = vcmp.eq.s32.totalorder %v505, 1
    %v514 = vsel %vm506, %v451, -2e+09
    %v515 = vsel %vm507, %v454, -2e+09
    %v516 = vsel %vm508, %v457, -2e+09
    %v517 = vsel %vm509, %v460, -2e+09
    %v518 = vsel %vm510, %v463, -2e+09
    %v519 = vsel %vm511, %v466, -2e+09
    %v520 = vsel %vm512, %v469, -2e+09
    %v521 = vsel %vm513, %v472, -2e+09
    %vm522 = vcmask 130048
    %v523 = vsel %vm522, %v514, -inf
    %v524 = vrot.slane %v523, 4
    %v525 = vmax.f32 %v523, %v524
    %v526 = vrot.slane %v525, 2
    %v527 = vmax.f32 %v525, %v526
    %v528 = vrot.slane %v527, 1
    %v529 = vmax.f32 %v527, %v528
    %v530 = vsel %vm522, %v515, -inf
    %v531 = vrot.slane %v530, 4
    %v532 = vmax.f32 %v530, %v531
    %v533 = vrot.slane %v532, 2
    %v534 = vmax.f32 %v532, %v533
    %v535 = vrot.slane %v534, 1
    %v536 = vmax.f32 %v534, %v535
    %v537 = vsel %vm522, %v516, -inf
    %v538 = vrot.slane %v537, 4
    %v539 = vmax.f32 %v537, %v538
    %v540 = vrot.slane %v539, 2
    %v541 = vmax.f32 %v539, %v540
    %v542 = vrot.slane %v541, 1
    %v543 = vmax.f32 %v541, %v542
    %v544 = vsel %vm522, %v517, -inf
    %v545 = vrot.slane %v544, 4
    %v546 = vmax.f32 %v544, %v545
    %v547 = vrot.slane %v546, 2
    %v548 = vmax.f32 %v546, %v547
    %v549 = vrot.slane %v548, 1
    %v550 = vmax.f32 %v548, %v549
    %v551 = vsel %vm522, %v518, -inf
    %v552 = vrot.slane %v551, 4
    %v553 = vmax.f32 %v551, %v552
    %v554 = vrot.slane %v553, 2
    %v555 = vmax.f32 %v553, %v554
    %v556 = vrot.slane %v555, 1
    %v557 = vmax.f32 %v555, %v556
    %v558 = vsel %vm522, %v519, -inf
    %v559 = vrot.slane %v558, 4
    %v560 = vmax.f32 %v558, %v559
    %v561 = vrot.slane %v560, 2
    %v562 = vmax.f32 %v560, %v561
    %v563 = vrot.slane %v562, 1
    %v564 = vmax.f32 %v562, %v563
    %v565 = vsel %vm522, %v520, -inf
    %v566 = vrot.slane %v565, 4
    %v567 = vmax.f32 %v565, %v566
    %v568 = vrot.slane %v567, 2
    %v569 = vmax.f32 %v567, %v568
    %v570 = vrot.slane %v569, 1
    %v571 = vmax.f32 %v569, %v570
    %v572 = vsel %vm522, %v521, -inf
    %v573 = vrot.slane %v572, 4
    %v574 = vmax.f32 %v572, %v573
    %v575 = vrot.slane %v574, 2
    %v576 = vmax.f32 %v574, %v575
    %v577 = vrot.slane %v576, 1
    %v578 = vmax.f32 %v576, %v577
    %s579 = scalar_lea.vmem %s2, 32
    %v580 = vld [vmem:[%s579] sm:$0xff]
    %v581 = vld [vmem:[%s579 + $0x8] sm:$0xff]
    %v582 = vld [vmem:[%s579 + $0x10] sm:$0xff]
    %v583 = vld [vmem:[%s579 + $0x18] sm:$0xff]
    %v585 = vsel %vm522, %v451, 0
    %v588 = vsel %vm522, %v454, 0
    %v591 = vsel %vm522, %v457, 0
    %v594 = vsel %vm522, %v460, 0
    %v597 = vsel %vm522, %v463, 0
    %v600 = vsel %vm522, %v466, 0
    %v603 = vsel %vm522, %v469, 0
    %v606 = vsel %vm522, %v472, 0
    %608 = vmatpush.msra.mxu0 0.0
    %609 = vmatpush.msra.mxu0 0.0
    %610 = vmatpush.msra.mxu0 0.0
    %611 = vmatpush.msra.mxu0 0.0
    %612 = vmatpush.msra.mxu0 0.0
    %613 = vmatpush.msra.mxu0 0.0
    %614 = vmatpush.msra.mxu0 0.0
    %615 = vmatpush.msra.mxu0 0.0
    %616 = vmatpush.msra.mxu0 0.0
    %617 = vmatpush.msra.mxu0 0.0
    %618 = vmatpush.msra.mxu0 0.0
    %619 = vmatpush.msra.mxu0 0.0
    %620 = vmatpush.msra.mxu0 0.0
    %621 = vmatpush.msra.mxu0 0.0
    %622 = vmatpush.msra.mxu0 %v583
    %623 = vmatpush.msra.mxu0 %v582
    %624 = vmatmul.f32.gmra.mxu0 %v585
    %v625 = vpop.f32.mrf.mxu0
    %v626 = vadd.f32 0.0, %v625
    %627 = vmatmul.f32.gmra.mxu0 %v588
    %v628 = vpop.f32.mrf.mxu0
    %v629 = vadd.f32 0.0, %v628
    %630 = vmatmul.f32.gmra.mxu0 %v591
    %v631 = vpop.f32.mrf.mxu0
    %v632 = vadd.f32 0.0, %v631
    %633 = vmatmul.f32.gmra.mxu0 %v594
    %v634 = vpop.f32.mrf.mxu0
    %v635 = vadd.f32 0.0, %v634
    %636 = vmatmul.f32.gmra.mxu0 %v597
    %v637 = vpop.f32.mrf.mxu0
    %v638 = vadd.f32 0.0, %v637
    %639 = vmatmul.f32.gmra.mxu0 %v600
    %v640 = vpop.f32.mrf.mxu0
    %v641 = vadd.f32 0.0, %v640
    %642 = vmatmul.f32.gmra.mxu0 %v603
    %v643 = vpop.f32.mrf.mxu0
    %v644 = vadd.f32 0.0, %v643
    %645 = vmatmul.f32.gmra.mxu0 %v606
    %v646 = vpop.f32.mrf.mxu0
    %v647 = vadd.f32 0.0, %v646
    %648 = vdwg.mxu0
    %vm657 = vcmask 1041409
    %v658 = vsel %vm657, %v536, %v529
    %vm659 = vcmask 1042434
    %v660 = vsel %vm659, %v543, %v658
    %vm661 = vcmask 1043459
    %v662 = vsel %vm661, %v550, %v660
    %vm663 = vcmask 1044484
    %v664 = vsel %vm663, %v557, %v662
    %vm665 = vcmask 1045509
    %v666 = vsel %vm665, %v564, %v664
    %vm667 = vcmask 1046534
    %v668 = vsel %vm667, %v571, %v666
    %vm669 = vcmask 1047559
    %v670 = vsel %vm669, %v578, %v668
    %v671 = vsel %vm522, %v670, 0
    %673 = vmatpush.msra.mxu0 0.0
    %674 = vmatpush.msra.mxu0 0.0
    %675 = vmatpush.msra.mxu0 0.0
    %676 = vmatpush.msra.mxu0 0.0
    %677 = vmatpush.msra.mxu0 0.0
    %678 = vmatpush.msra.mxu0 0.0
    %679 = vmatpush.msra.mxu0 0.0
    %680 = vmatpush.msra.mxu0 0.0
    %681 = vmatpush.msra.mxu0 0.0
    %682 = vmatpush.msra.mxu0 0.0
    %683 = vmatpush.msra.mxu0 0.0
    %684 = vmatpush.msra.mxu0 0.0
    %685 = vmatpush.msra.mxu0 0.0
    %686 = vmatpush.msra.mxu0 0.0
    %687 = vmatpush.msra.mxu0 %v581
    %688 = vmatpush.msra.mxu0 %v580
    %689 = vmatmul.f32.gmra.mxu0 %v671
    %v690 = vpop.f32.mrf.mxu0
    %v691 = vadd.f32 0.0, %v690
    %692 = vdwg.mxu0
    %v694 = vrot.slane %v691, 1
    %v695 = vrot.slane %v691, 2
    %v696 = vrot.slane %v691, 3
    %v697 = vrot.slane %v691, 4
    %v698 = vrot.slane %v691, 5
    %v699 = vrot.slane %v691, 6
    %v700 = vrot.slane %v691, 7
    %v701 = vperm.slane %v691, 0
    %v702 = vperm.slane %v694, 0
    %v703 = vperm.slane %v695, 0
    %v704 = vperm.slane %v696, 0
    %v705 = vperm.slane %v697, 0
    %v706 = vperm.slane %v698, 0
    %v707 = vperm.slane %v699, 0
    %v708 = vperm.slane %v700, 0
    %v717 = vadd.f32 %v626, %v701
    %v718 = vadd.f32 %v629, %v702
    %v719 = vadd.f32 %v632, %v703
    %v720 = vadd.f32 %v635, %v704
    %v721 = vadd.f32 %v638, %v705
    %v722 = vadd.f32 %v641, %v706
    %v723 = vadd.f32 %v644, %v707
    %v724 = vadd.f32 %v647, %v708
    %s725 = scalar_lea.vmem %s3, 1
    %v726 = vld [vmem:[%s725] sm:$0x1]
    %v728 = vperm.slane %v726, 0
    %v730 = vadd.f32 %v717, %v728
    %v731 = vadd.f32 %v718, %v728
    %v732 = vadd.f32 %v719, %v728
    %v733 = vadd.f32 %v720, %v728
    %v734 = vadd.f32 %v721, %v728
    %v735 = vadd.f32 %v722, %v728
    %v736 = vadd.f32 %v723, %v728
    %v737 = vadd.f32 %v724, %v728
    %v738 = vsel %vm88, %v730, 0.0
    %739 = vadd.xlane.f32.xlu0 %v738
    %v740 = vpop.xlane.xlu0 %739
    %v741 = vsel %vm88, %v731, 0.0
    %742 = vadd.xlane.f32.xlu0 %v741
    %v743 = vpop.xlane.xlu0 %742
    %v744 = vsel %vm88, %v732, 0.0
    %745 = vadd.xlane.f32.xlu0 %v744
    %v746 = vpop.xlane.xlu0 %745
    %v747 = vsel %vm88, %v733, 0.0
    %748 = vadd.xlane.f32.xlu0 %v747
    %v749 = vpop.xlane.xlu0 %748
    %v750 = vsel %vm88, %v734, 0.0
    %751 = vadd.xlane.f32.xlu0 %v750
    %v752 = vpop.xlane.xlu0 %751
    %v753 = vsel %vm88, %v735, 0.0
    %754 = vadd.xlane.f32.xlu0 %v753
    %v755 = vpop.xlane.xlu0 %754
    %v756 = vsel %vm88, %v736, 0.0
    %757 = vadd.xlane.f32.xlu0 %v756
    %v758 = vpop.xlane.xlu0 %757
    %v759 = vsel %vm88, %v737, 0.0
    %760 = vadd.xlane.f32.xlu0 %v759
    %v761 = vpop.xlane.xlu0 %760
    %v762 = vmul.f32 %v740, %v184
    %v763 = vmul.f32 %v743, %v184
    %v764 = vmul.f32 %v746, %v184
    %v765 = vmul.f32 %v749, %v184
    %v766 = vmul.f32 %v752, %v184
    %v767 = vmul.f32 %v755, %v184
    %v768 = vmul.f32 %v758, %v184
    %v769 = vmul.f32 %v761, %v184
    %v770 = vmul.f32 %v730, %v730
    %v771 = vmul.f32 %v731, %v731
    %v772 = vmul.f32 %v732, %v732
    %v773 = vmul.f32 %v733, %v733
    %v774 = vmul.f32 %v734, %v734
    %v775 = vmul.f32 %v735, %v735
    %v776 = vmul.f32 %v736, %v736
    %v777 = vmul.f32 %v737, %v737
    %v778 = vsel %vm88, %v770, 0.0
    %779 = vadd.xlane.f32.xlu0 %v778
    %v780 = vpop.xlane.xlu0 %779
    %v781 = vsel %vm88, %v771, 0.0
    %782 = vadd.xlane.f32.xlu0 %v781
    %v783 = vpop.xlane.xlu0 %782
    %v784 = vsel %vm88, %v772, 0.0
    %785 = vadd.xlane.f32.xlu0 %v784
    %v786 = vpop.xlane.xlu0 %785
    %v787 = vsel %vm88, %v773, 0.0
    %788 = vadd.xlane.f32.xlu0 %v787
    %v789 = vpop.xlane.xlu0 %788
    %v790 = vsel %vm88, %v774, 0.0
    %791 = vadd.xlane.f32.xlu0 %v790
    %v792 = vpop.xlane.xlu0 %791
    %v793 = vsel %vm88, %v775, 0.0
    %794 = vadd.xlane.f32.xlu0 %v793
    %v795 = vpop.xlane.xlu0 %794
    %v796 = vsel %vm88, %v776, 0.0
    %797 = vadd.xlane.f32.xlu0 %v796
    %v798 = vpop.xlane.xlu0 %797
    %v799 = vsel %vm88, %v777, 0.0
    %800 = vadd.xlane.f32.xlu0 %v799
    %v801 = vpop.xlane.xlu0 %800
    %v802 = vmul.f32 %v780, %v184
    %v803 = vmul.f32 %v783, %v184
    %v804 = vmul.f32 %v786, %v184
    %v805 = vmul.f32 %v789, %v184
    %v806 = vmul.f32 %v792, %v184
    %v807 = vmul.f32 %v795, %v184
    %v808 = vmul.f32 %v798, %v184
    %v809 = vmul.f32 %v801, %v184
    %v810 = vmul.f32 %v762, %v762
    %v811 = vmul.f32 %v763, %v763
    %v812 = vmul.f32 %v764, %v764
    %v813 = vmul.f32 %v765, %v765
    %v814 = vmul.f32 %v766, %v766
    %v815 = vmul.f32 %v767, %v767
    %v816 = vmul.f32 %v768, %v768
    %v817 = vmul.f32 %v769, %v769
    %v818 = vsub.f32 %v802, %v810
    %v819 = vsub.f32 %v803, %v811
    %v820 = vsub.f32 %v804, %v812
    %v821 = vsub.f32 %v805, %v813
    %v822 = vsub.f32 %v806, %v814
    %v823 = vsub.f32 %v807, %v815
    %v824 = vsub.f32 %v808, %v816
    %v825 = vsub.f32 %v809, %v817
    %v826 = vmax.f32 %v818, 0.0
    %v827 = vmax.f32 %v819, 0.0
    %v828 = vmax.f32 %v820, 0.0
    %v829 = vmax.f32 %v821, 0.0
    %v830 = vmax.f32 %v822, 0.0
    %v831 = vmax.f32 %v823, 0.0
    %v832 = vmax.f32 %v824, 0.0
    %v833 = vmax.f32 %v825, 0.0
    %s834 = scalar_lea.vmem %s4, 1
    %v835 = vld [vmem:[%s834] sm:$0x1]
    %v836 = vadd.f32 %v826, 1e-05
    %v837 = vadd.f32 %v827, 1e-05
    %v838 = vadd.f32 %v828, 1e-05
    %v839 = vadd.f32 %v829, 1e-05
    %v840 = vadd.f32 %v830, 1e-05
    %v841 = vadd.f32 %v831, 1e-05
    %v842 = vadd.f32 %v832, 1e-05
    %v843 = vadd.f32 %v833, 1e-05
    %v844 = vrsqrt.pop %v836
    %v845 = vmul.f32 %v844, %v836
    %v846 = vmul.f32 %v845, %v844
    %v847 = vmul.f32 0.5, %v846
    %v848 = vsub.f32 1.5, %v847
    %v849 = vmul.f32 %v844, %v848
    %vm850 = vweird.f32 %v836
    %vm851 = vweird.f32 %v844
    %vm852 = vmor %vm850, %vm851
    %v853 = vsel %vm852, %v844, %v849
    %v854 = vrsqrt.pop %v837
    %v855 = vmul.f32 %v854, %v837
    %v856 = vmul.f32 %v855, %v854
    %v857 = vmul.f32 0.5, %v856
    %v858 = vsub.f32 1.5, %v857
    %v859 = vmul.f32 %v854, %v858
    %vm860 = vweird.f32 %v837
    %vm861 = vweird.f32 %v854
    %vm862 = vmor %vm860, %vm861
    %v863 = vsel %vm862, %v854, %v859
    %v864 = vrsqrt.pop %v838
    %v865 = vmul.f32 %v864, %v838
    %v866 = vmul.f32 %v865, %v864
    %v867 = vmul.f32 0.5, %v866
    %v868 = vsub.f32 1.5, %v867
    %v869 = vmul.f32 %v864, %v868
    %vm870 = vweird.f32 %v838
    %vm871 = vweird.f32 %v864
    %vm872 = vmor %vm870, %vm871
    %v873 = vsel %vm872, %v864, %v869
    %v874 = vrsqrt.pop %v839
    %v875 = vmul.f32 %v874, %v839
    %v876 = vmul.f32 %v875, %v874
    %v877 = vmul.f32 0.5, %v876
    %v878 = vsub.f32 1.5, %v877
    %v879 = vmul.f32 %v874, %v878
    %vm880 = vweird.f32 %v839
    %vm881 = vweird.f32 %v874
    %vm882 = vmor %vm880, %vm881
    %v883 = vsel %vm882, %v874, %v879
    %v884 = vrsqrt.pop %v840
    %v885 = vmul.f32 %v884, %v840
    %v886 = vmul.f32 %v885, %v884
    %v887 = vmul.f32 0.5, %v886
    %v888 = vsub.f32 1.5, %v887
    %v889 = vmul.f32 %v884, %v888
    %vm890 = vweird.f32 %v840
    %vm891 = vweird.f32 %v884
    %vm892 = vmor %vm890, %vm891
    %v893 = vsel %vm892, %v884, %v889
    %v894 = vrsqrt.pop %v841
    %v895 = vmul.f32 %v894, %v841
    %v896 = vmul.f32 %v895, %v894
    %v897 = vmul.f32 0.5, %v896
    %v898 = vsub.f32 1.5, %v897
    %v899 = vmul.f32 %v894, %v898
    %vm900 = vweird.f32 %v841
    %vm901 = vweird.f32 %v894
    %vm902 = vmor %vm900, %vm901
    %v903 = vsel %vm902, %v894, %v899
    %v904 = vrsqrt.pop %v842
    %v905 = vmul.f32 %v904, %v842
    %v906 = vmul.f32 %v905, %v904
    %v907 = vmul.f32 0.5, %v906
    %v908 = vsub.f32 1.5, %v907
    %v909 = vmul.f32 %v904, %v908
    %vm910 = vweird.f32 %v842
    %vm911 = vweird.f32 %v904
    %vm912 = vmor %vm910, %vm911
    %v913 = vsel %vm912, %v904, %v909
    %v914 = vrsqrt.pop %v843
    %v915 = vmul.f32 %v914, %v843
    %v916 = vmul.f32 %v915, %v914
    %v917 = vmul.f32 0.5, %v916
    %v918 = vsub.f32 1.5, %v917
    %v919 = vmul.f32 %v914, %v918
    %vm920 = vweird.f32 %v843
    %vm921 = vweird.f32 %v914
    %vm922 = vmor %vm920, %vm921
    %v923 = vsel %vm922, %v914, %v919
    %v925 = vperm.slane %v835, 0
    %v927 = vmul.f32 %v925, %v853
    %v928 = vmul.f32 %v925, %v863
    %v929 = vmul.f32 %v925, %v873
    %v930 = vmul.f32 %v925, %v883
    %v931 = vmul.f32 %v925, %v893
    %v932 = vmul.f32 %v925, %v903
    %v933 = vmul.f32 %v925, %v913
    %v934 = vmul.f32 %v925, %v923
    %v935 = vmul.f32 %v730, %v927
    %v936 = vmul.f32 %v731, %v928
    %v937 = vmul.f32 %v732, %v929
    %v938 = vmul.f32 %v733, %v930
    %v939 = vmul.f32 %v734, %v931
    %v940 = vmul.f32 %v735, %v932
    %v941 = vmul.f32 %v736, %v933
    %v942 = vmul.f32 %v737, %v934
    %s943 = scalar_lea.vmem %s5, 1
    %v944 = vld [vmem:[%s943] sm:$0x1]
    %v945 = vmul.f32 %v762, %v927
    %v946 = vmul.f32 %v763, %v928
    %v947 = vmul.f32 %v764, %v929
    %v948 = vmul.f32 %v765, %v930
    %v949 = vmul.f32 %v766, %v931
    %v950 = vmul.f32 %v767, %v932
    %v951 = vmul.f32 %v768, %v933
    %v952 = vmul.f32 %v769, %v934
    %v954 = vperm.slane %v944, 0
    %v956 = vsub.f32 %v954, %v945
    %v957 = vsub.f32 %v954, %v946
    %v958 = vsub.f32 %v954, %v947
    %v959 = vsub.f32 %v954, %v948
    %v960 = vsub.f32 %v954, %v949
    %v961 = vsub.f32 %v954, %v950
    %v962 = vsub.f32 %v954, %v951
    %v963 = vsub.f32 %v954, %v952
    %v964 = vadd.f32 %v935, %v956
    %v965 = vadd.f32 %v936, %v957
    %v966 = vadd.f32 %v937, %v958
    %v967 = vadd.f32 %v938, %v959
    %v968 = vadd.f32 %v939, %v960
    %v969 = vadd.f32 %v940, %v961
    %v970 = vadd.f32 %v941, %v962
    %v971 = vadd.f32 %v942, %v963
    %v972 = vmax.f32 %v964, 0.0
    %v973 = vmax.f32 %v965, 0.0
    %v974 = vmax.f32 %v966, 0.0
    %v975 = vmax.f32 %v967, 0.0
    %v976 = vmax.f32 %v968, 0.0
    %v977 = vmax.f32 %v969, 0.0
    %v978 = vmax.f32 %v970, 0.0
    %v979 = vmax.f32 %v971, 0.0
    %s980 = scalar_lea.vmem %s6, 32
    %v981 = vld [vmem:[%s980] sm:$0xff]
    %v982 = vld [vmem:[%s980 + $0x8] sm:$0xff]
    %v983 = vld [vmem:[%s980 + $0x10] sm:$0xff]
    %v984 = vld [vmem:[%s980 + $0x18] sm:$0xff]
    %s985 = scalar_lea.vmem %s7, 1
    %v986 = vld [vmem:[%s985] sm:$0x1]
    %v988 = vperm.slane %v986, 0
    %v991 = vsel %vm88, %v972, 0
    %v994 = vsel %vm88, %v973, 0
    %v997 = vsel %vm88, %v974, 0
    %v1000 = vsel %vm88, %v975, 0
    %v1003 = vsel %vm88, %v976, 0
    %v1006 = vsel %vm88, %v977, 0
    %v1009 = vsel %vm88, %v978, 0
    %v1012 = vsel %vm88, %v979, 0
    %1014 = vmatpush.msra.mxu0 0.0
    %1015 = vmatpush.msra.mxu0 0.0
    %1016 = vmatpush.msra.mxu0 0.0
    %1017 = vmatpush.msra.mxu0 0.0
    %1018 = vmatpush.msra.mxu0 0.0
    %1019 = vmatpush.msra.mxu0 0.0
    %1020 = vmatpush.msra.mxu0 0.0
    %1021 = vmatpush.msra.mxu0 0.0
    %1022 = vmatpush.msra.mxu0 0.0
    %1023 = vmatpush.msra.mxu0 0.0
    %1024 = vmatpush.msra.mxu0 0.0
    %1025 = vmatpush.msra.mxu0 0.0
    %1026 = vmatpush.msra.mxu0 %v984
    %1027 = vmatpush.msra.mxu0 %v983
    %1028 = vmatpush.msra.mxu0 %v982
    %1029 = vmatpush.msra.mxu0 %v981
    %1030 = vmatmul.f32.gmra.mxu0 %v991
    %v1031 = vpop.f32.mrf.mxu0
    %v1032 = vadd.f32 %v988, %v1031
    %1033 = vmatmul.f32.gmra.mxu0 %v994
    %v1034 = vpop.f32.mrf.mxu0
    %v1035 = vadd.f32 %v988, %v1034
    %1036 = vmatmul.f32.gmra.mxu0 %v997
    %v1037 = vpop.f32.mrf.mxu0
    %v1038 = vadd.f32 %v988, %v1037
    %1039 = vmatmul.f32.gmra.mxu0 %v1000
    %v1040 = vpop.f32.mrf.mxu0
    %v1041 = vadd.f32 %v988, %v1040
    %1042 = vmatmul.f32.gmra.mxu0 %v1003
    %v1043 = vpop.f32.mrf.mxu0
    %v1044 = vadd.f32 %v988, %v1043
    %1045 = vmatmul.f32.gmra.mxu0 %v1006
    %v1046 = vpop.f32.mrf.mxu0
    %v1047 = vadd.f32 %v988, %v1046
    %1048 = vmatmul.f32.gmra.mxu0 %v1009
    %v1049 = vpop.f32.mrf.mxu0
    %v1050 = vadd.f32 %v988, %v1049
    %1051 = vmatmul.f32.gmra.mxu0 %v1012
    %v1052 = vpop.f32.mrf.mxu0
    %v1053 = vadd.f32 %v988, %v1052
    %1054 = vdwg.mxu0
    %v1055 = vsel %vm506, %v1032, -2e+09
    %v1056 = vsel %vm507, %v1035, -2e+09
    %v1057 = vsel %vm508, %v1038, -2e+09
    %v1058 = vsel %vm509, %v1041, -2e+09
    %v1059 = vsel %vm510, %v1044, -2e+09
    %v1060 = vsel %vm511, %v1047, -2e+09
    %v1061 = vsel %vm512, %v1050, -2e+09
    %v1062 = vsel %vm513, %v1053, -2e+09
    %v1063 = vsel %vm522, %v1055, -inf
    %v1064 = vrot.slane %v1063, 4
    %v1065 = vmax.f32 %v1063, %v1064
    %v1066 = vrot.slane %v1065, 2
    %v1067 = vmax.f32 %v1065, %v1066
    %v1068 = vrot.slane %v1067, 1
    %v1069 = vmax.f32 %v1067, %v1068
    %v1070 = vsel %vm522, %v1056, -inf
    %v1071 = vrot.slane %v1070, 4
    %v1072 = vmax.f32 %v1070, %v1071
    %v1073 = vrot.slane %v1072, 2
    %v1074 = vmax.f32 %v1072, %v1073
    %v1075 = vrot.slane %v1074, 1
    %v1076 = vmax.f32 %v1074, %v1075
    %v1077 = vsel %vm522, %v1057, -inf
    %v1078 = vrot.slane %v1077, 4
    %v1079 = vmax.f32 %v1077, %v1078
    %v1080 = vrot.slane %v1079, 2
    %v1081 = vmax.f32 %v1079, %v1080
    %v1082 = vrot.slane %v1081, 1
    %v1083 = vmax.f32 %v1081, %v1082
    %v1084 = vsel %vm522, %v1058, -inf
    %v1085 = vrot.slane %v1084, 4
    %v1086 = vmax.f32 %v1084, %v1085
    %v1087 = vrot.slane %v1086, 2
    %v1088 = vmax.f32 %v1086, %v1087
    %v1089 = vrot.slane %v1088, 1
    %v1090 = vmax.f32 %v1088, %v1089
    %v1091 = vsel %vm522, %v1059, -inf
    %v1092 = vrot.slane %v1091, 4
    %v1093 = vmax.f32 %v1091, %v1092
    %v1094 = vrot.slane %v1093, 2
    %v1095 = vmax.f32 %v1093, %v1094
    %v1096 = vrot.slane %v1095, 1
    %v1097 = vmax.f32 %v1095, %v1096
    %v1098 = vsel %vm522, %v1060, -inf
    %v1099 = vrot.slane %v1098, 4
    %v1100 = vmax.f32 %v1098, %v1099
    %v1101 = vrot.slane %v1100, 2
    %v1102 = vmax.f32 %v1100, %v1101
    %v1103 = vrot.slane %v1102, 1
    %v1104 = vmax.f32 %v1102, %v1103
    %v1105 = vsel %vm522, %v1061, -inf
    %v1106 = vrot.slane %v1105, 4
    %v1107 = vmax.f32 %v1105, %v1106
    %v1108 = vrot.slane %v1107, 2
    %v1109 = vmax.f32 %v1107, %v1108
    %v1110 = vrot.slane %v1109, 1
    %v1111 = vmax.f32 %v1109, %v1110
    %v1112 = vsel %vm522, %v1062, -inf
    %v1113 = vrot.slane %v1112, 4
    %v1114 = vmax.f32 %v1112, %v1113
    %v1115 = vrot.slane %v1114, 2
    %v1116 = vmax.f32 %v1114, %v1115
    %v1117 = vrot.slane %v1116, 1
    %v1118 = vmax.f32 %v1116, %v1117
    %s1119 = scalar_lea.vmem %s2, 64
    %v1120 = vld [vmem:[%s1119] sm:$0xff]
    %v1121 = vld [vmem:[%s1119 + $0x8] sm:$0xff]
    %v1122 = vld [vmem:[%s1119 + $0x10] sm:$0xff]
    %v1123 = vld [vmem:[%s1119 + $0x18] sm:$0xff]
    %v1125 = vsel %vm522, %v1032, 0
    %v1128 = vsel %vm522, %v1035, 0
    %v1131 = vsel %vm522, %v1038, 0
    %v1134 = vsel %vm522, %v1041, 0
    %v1137 = vsel %vm522, %v1044, 0
    %v1140 = vsel %vm522, %v1047, 0
    %v1143 = vsel %vm522, %v1050, 0
    %v1146 = vsel %vm522, %v1053, 0
    %1148 = vmatpush.msra.mxu0 0.0
    %1149 = vmatpush.msra.mxu0 0.0
    %1150 = vmatpush.msra.mxu0 0.0
    %1151 = vmatpush.msra.mxu0 0.0
    %1152 = vmatpush.msra.mxu0 0.0
    %1153 = vmatpush.msra.mxu0 0.0
    %1154 = vmatpush.msra.mxu0 0.0
    %1155 = vmatpush.msra.mxu0 0.0
    %1156 = vmatpush.msra.mxu0 0.0
    %1157 = vmatpush.msra.mxu0 0.0
    %1158 = vmatpush.msra.mxu0 0.0
    %1159 = vmatpush.msra.mxu0 0.0
    %1160 = vmatpush.msra.mxu0 0.0
    %1161 = vmatpush.msra.mxu0 0.0
    %1162 = vmatpush.msra.mxu0 %v1123
    %1163 = vmatpush.msra.mxu0 %v1122
    %1164 = vmatmul.f32.gmra.mxu0 %v1125
    %v1165 = vpop.f32.mrf.mxu0
    %v1166 = vadd.f32 0.0, %v1165
    %1167 = vmatmul.f32.gmra.mxu0 %v1128
    %v1168 = vpop.f32.mrf.mxu0
    %v1169 = vadd.f32 0.0, %v1168
    %1170 = vmatmul.f32.gmra.mxu0 %v1131
    %v1171 = vpop.f32.mrf.mxu0
    %v1172 = vadd.f32 0.0, %v1171
    %1173 = vmatmul.f32.gmra.mxu0 %v1134
    %v1174 = vpop.f32.mrf.mxu0
    %v1175 = vadd.f32 0.0, %v1174
    %1176 = vmatmul.f32.gmra.mxu0 %v1137
    %v1177 = vpop.f32.mrf.mxu0
    %v1178 = vadd.f32 0.0, %v1177
    %1179 = vmatmul.f32.gmra.mxu0 %v1140
    %v1180 = vpop.f32.mrf.mxu0
    %v1181 = vadd.f32 0.0, %v1180
    %1182 = vmatmul.f32.gmra.mxu0 %v1143
    %v1183 = vpop.f32.mrf.mxu0
    %v1184 = vadd.f32 0.0, %v1183
    %1185 = vmatmul.f32.gmra.mxu0 %v1146
    %v1186 = vpop.f32.mrf.mxu0
    %v1187 = vadd.f32 0.0, %v1186
    %1188 = vdwg.mxu0
    %v1197 = vsel %vm657, %v1076, %v1069
    %v1198 = vsel %vm659, %v1083, %v1197
    %v1199 = vsel %vm661, %v1090, %v1198
    %v1200 = vsel %vm663, %v1097, %v1199
    %v1201 = vsel %vm665, %v1104, %v1200
    %v1202 = vsel %vm667, %v1111, %v1201
    %v1203 = vsel %vm669, %v1118, %v1202
    %v1204 = vsel %vm522, %v1203, 0
    %1206 = vmatpush.msra.mxu0 0.0
    %1207 = vmatpush.msra.mxu0 0.0
    %1208 = vmatpush.msra.mxu0 0.0
    %1209 = vmatpush.msra.mxu0 0.0
    %1210 = vmatpush.msra.mxu0 0.0
    %1211 = vmatpush.msra.mxu0 0.0
    %1212 = vmatpush.msra.mxu0 0.0
    %1213 = vmatpush.msra.mxu0 0.0
    %1214 = vmatpush.msra.mxu0 0.0
    %1215 = vmatpush.msra.mxu0 0.0
    %1216 = vmatpush.msra.mxu0 0.0
    %1217 = vmatpush.msra.mxu0 0.0
    %1218 = vmatpush.msra.mxu0 0.0
    %1219 = vmatpush.msra.mxu0 0.0
    %1220 = vmatpush.msra.mxu0 %v1121
    %1221 = vmatpush.msra.mxu0 %v1120
    %1222 = vmatmul.f32.gmra.mxu0 %v1204
    %v1223 = vpop.f32.mrf.mxu0
    %v1224 = vadd.f32 0.0, %v1223
    %1225 = vdwg.mxu0
    %v1227 = vrot.slane %v1224, 1
    %v1228 = vrot.slane %v1224, 2
    %v1229 = vrot.slane %v1224, 3
    %v1230 = vrot.slane %v1224, 4
    %v1231 = vrot.slane %v1224, 5
    %v1232 = vrot.slane %v1224, 6
    %v1233 = vrot.slane %v1224, 7
    %v1234 = vperm.slane %v1224, 0
    %v1235 = vperm.slane %v1227, 0
    %v1236 = vperm.slane %v1228, 0
    %v1237 = vperm.slane %v1229, 0
    %v1238 = vperm.slane %v1230, 0
    %v1239 = vperm.slane %v1231, 0
    %v1240 = vperm.slane %v1232, 0
    %v1241 = vperm.slane %v1233, 0
    %v1250 = vadd.f32 %v1166, %v1234
    %v1251 = vadd.f32 %v1169, %v1235
    %v1252 = vadd.f32 %v1172, %v1236
    %v1253 = vadd.f32 %v1175, %v1237
    %v1254 = vadd.f32 %v1178, %v1238
    %v1255 = vadd.f32 %v1181, %v1239
    %v1256 = vadd.f32 %v1184, %v1240
    %v1257 = vadd.f32 %v1187, %v1241
    %s1258 = scalar_lea.vmem %s3, 2
    %v1259 = vld [vmem:[%s1258] sm:$0x1]
    %v1261 = vperm.slane %v1259, 0
    %v1263 = vadd.f32 %v1250, %v1261
    %v1264 = vadd.f32 %v1251, %v1261
    %v1265 = vadd.f32 %v1252, %v1261
    %v1266 = vadd.f32 %v1253, %v1261
    %v1267 = vadd.f32 %v1254, %v1261
    %v1268 = vadd.f32 %v1255, %v1261
    %v1269 = vadd.f32 %v1256, %v1261
    %v1270 = vadd.f32 %v1257, %v1261
    %v1271 = vsel %vm88, %v1263, 0.0
    %1272 = vadd.xlane.f32.xlu0 %v1271
    %v1273 = vpop.xlane.xlu0 %1272
    %v1274 = vsel %vm88, %v1264, 0.0
    %1275 = vadd.xlane.f32.xlu0 %v1274
    %v1276 = vpop.xlane.xlu0 %1275
    %v1277 = vsel %vm88, %v1265, 0.0
    %1278 = vadd.xlane.f32.xlu0 %v1277
    %v1279 = vpop.xlane.xlu0 %1278
    %v1280 = vsel %vm88, %v1266, 0.0
    %1281 = vadd.xlane.f32.xlu0 %v1280
    %v1282 = vpop.xlane.xlu0 %1281
    %v1283 = vsel %vm88, %v1267, 0.0
    %1284 = vadd.xlane.f32.xlu0 %v1283
    %v1285 = vpop.xlane.xlu0 %1284
    %v1286 = vsel %vm88, %v1268, 0.0
    %1287 = vadd.xlane.f32.xlu0 %v1286
    %v1288 = vpop.xlane.xlu0 %1287
    %v1289 = vsel %vm88, %v1269, 0.0
    %1290 = vadd.xlane.f32.xlu0 %v1289
    %v1291 = vpop.xlane.xlu0 %1290
    %v1292 = vsel %vm88, %v1270, 0.0
    %1293 = vadd.xlane.f32.xlu0 %v1292
    %v1294 = vpop.xlane.xlu0 %1293
    %v1295 = vmul.f32 %v1273, %v184
    %v1296 = vmul.f32 %v1276, %v184
    %v1297 = vmul.f32 %v1279, %v184
    %v1298 = vmul.f32 %v1282, %v184
    %v1299 = vmul.f32 %v1285, %v184
    %v1300 = vmul.f32 %v1288, %v184
    %v1301 = vmul.f32 %v1291, %v184
    %v1302 = vmul.f32 %v1294, %v184
    %v1303 = vmul.f32 %v1263, %v1263
    %v1304 = vmul.f32 %v1264, %v1264
    %v1305 = vmul.f32 %v1265, %v1265
    %v1306 = vmul.f32 %v1266, %v1266
    %v1307 = vmul.f32 %v1267, %v1267
    %v1308 = vmul.f32 %v1268, %v1268
    %v1309 = vmul.f32 %v1269, %v1269
    %v1310 = vmul.f32 %v1270, %v1270
    %v1311 = vsel %vm88, %v1303, 0.0
    %1312 = vadd.xlane.f32.xlu0 %v1311
    %v1313 = vpop.xlane.xlu0 %1312
    %v1314 = vsel %vm88, %v1304, 0.0
    %1315 = vadd.xlane.f32.xlu0 %v1314
    %v1316 = vpop.xlane.xlu0 %1315
    %v1317 = vsel %vm88, %v1305, 0.0
    %1318 = vadd.xlane.f32.xlu0 %v1317
    %v1319 = vpop.xlane.xlu0 %1318
    %v1320 = vsel %vm88, %v1306, 0.0
    %1321 = vadd.xlane.f32.xlu0 %v1320
    %v1322 = vpop.xlane.xlu0 %1321
    %v1323 = vsel %vm88, %v1307, 0.0
    %1324 = vadd.xlane.f32.xlu0 %v1323
    %v1325 = vpop.xlane.xlu0 %1324
    %v1326 = vsel %vm88, %v1308, 0.0
    %1327 = vadd.xlane.f32.xlu0 %v1326
    %v1328 = vpop.xlane.xlu0 %1327
    %v1329 = vsel %vm88, %v1309, 0.0
    %1330 = vadd.xlane.f32.xlu0 %v1329
    %v1331 = vpop.xlane.xlu0 %1330
    %v1332 = vsel %vm88, %v1310, 0.0
    %1333 = vadd.xlane.f32.xlu0 %v1332
    %v1334 = vpop.xlane.xlu0 %1333
    %v1335 = vmul.f32 %v1313, %v184
    %v1336 = vmul.f32 %v1316, %v184
    %v1337 = vmul.f32 %v1319, %v184
    %v1338 = vmul.f32 %v1322, %v184
    %v1339 = vmul.f32 %v1325, %v184
    %v1340 = vmul.f32 %v1328, %v184
    %v1341 = vmul.f32 %v1331, %v184
    %v1342 = vmul.f32 %v1334, %v184
    %v1343 = vmul.f32 %v1295, %v1295
    %v1344 = vmul.f32 %v1296, %v1296
    %v1345 = vmul.f32 %v1297, %v1297
    %v1346 = vmul.f32 %v1298, %v1298
    %v1347 = vmul.f32 %v1299, %v1299
    %v1348 = vmul.f32 %v1300, %v1300
    %v1349 = vmul.f32 %v1301, %v1301
    %v1350 = vmul.f32 %v1302, %v1302
    %v1351 = vsub.f32 %v1335, %v1343
    %v1352 = vsub.f32 %v1336, %v1344
    %v1353 = vsub.f32 %v1337, %v1345
    %v1354 = vsub.f32 %v1338, %v1346
    %v1355 = vsub.f32 %v1339, %v1347
    %v1356 = vsub.f32 %v1340, %v1348
    %v1357 = vsub.f32 %v1341, %v1349
    %v1358 = vsub.f32 %v1342, %v1350
    %v1359 = vmax.f32 %v1351, 0.0
    %v1360 = vmax.f32 %v1352, 0.0
    %v1361 = vmax.f32 %v1353, 0.0
    %v1362 = vmax.f32 %v1354, 0.0
    %v1363 = vmax.f32 %v1355, 0.0
    %v1364 = vmax.f32 %v1356, 0.0
    %v1365 = vmax.f32 %v1357, 0.0
    %v1366 = vmax.f32 %v1358, 0.0
    %s1367 = scalar_lea.vmem %s4, 2
    %v1368 = vld [vmem:[%s1367] sm:$0x1]
    %v1369 = vadd.f32 %v1359, 1e-05
    %v1370 = vadd.f32 %v1360, 1e-05
    %v1371 = vadd.f32 %v1361, 1e-05
    %v1372 = vadd.f32 %v1362, 1e-05
    %v1373 = vadd.f32 %v1363, 1e-05
    %v1374 = vadd.f32 %v1364, 1e-05
    %v1375 = vadd.f32 %v1365, 1e-05
    %v1376 = vadd.f32 %v1366, 1e-05
    %v1377 = vrsqrt.pop %v1369
    %v1378 = vmul.f32 %v1377, %v1369
    %v1379 = vmul.f32 %v1378, %v1377
    %v1380 = vmul.f32 0.5, %v1379
    %v1381 = vsub.f32 1.5, %v1380
    %v1382 = vmul.f32 %v1377, %v1381
    %vm1383 = vweird.f32 %v1369
    %vm1384 = vweird.f32 %v1377
    %vm1385 = vmor %vm1383, %vm1384
    %v1386 = vsel %vm1385, %v1377, %v1382
    %v1387 = vrsqrt.pop %v1370
    %v1388 = vmul.f32 %v1387, %v1370
    %v1389 = vmul.f32 %v1388, %v1387
    %v1390 = vmul.f32 0.5, %v1389
    %v1391 = vsub.f32 1.5, %v1390
    %v1392 = vmul.f32 %v1387, %v1391
    %vm1393 = vweird.f32 %v1370
    %vm1394 = vweird.f32 %v1387
    %vm1395 = vmor %vm1393, %vm1394
    %v1396 = vsel %vm1395, %v1387, %v1392
    %v1397 = vrsqrt.pop %v1371
    %v1398 = vmul.f32 %v1397, %v1371
    %v1399 = vmul.f32 %v1398, %v1397
    %v1400 = vmul.f32 0.5, %v1399
    %v1401 = vsub.f32 1.5, %v1400
    %v1402 = vmul.f32 %v1397, %v1401
    %vm1403 = vweird.f32 %v1371
    %vm1404 = vweird.f32 %v1397
    %vm1405 = vmor %vm1403, %vm1404
    %v1406 = vsel %vm1405, %v1397, %v1402
    %v1407 = vrsqrt.pop %v1372
    %v1408 = vmul.f32 %v1407, %v1372
    %v1409 = vmul.f32 %v1408, %v1407
    %v1410 = vmul.f32 0.5, %v1409
    %v1411 = vsub.f32 1.5, %v1410
    %v1412 = vmul.f32 %v1407, %v1411
    %vm1413 = vweird.f32 %v1372
    %vm1414 = vweird.f32 %v1407
    %vm1415 = vmor %vm1413, %vm1414
    %v1416 = vsel %vm1415, %v1407, %v1412
    %v1417 = vrsqrt.pop %v1373
    %v1418 = vmul.f32 %v1417, %v1373
    %v1419 = vmul.f32 %v1418, %v1417
    %v1420 = vmul.f32 0.5, %v1419
    %v1421 = vsub.f32 1.5, %v1420
    %v1422 = vmul.f32 %v1417, %v1421
    %vm1423 = vweird.f32 %v1373
    %vm1424 = vweird.f32 %v1417
    %vm1425 = vmor %vm1423, %vm1424
    %v1426 = vsel %vm1425, %v1417, %v1422
    %v1427 = vrsqrt.pop %v1374
    %v1428 = vmul.f32 %v1427, %v1374
    %v1429 = vmul.f32 %v1428, %v1427
    %v1430 = vmul.f32 0.5, %v1429
    %v1431 = vsub.f32 1.5, %v1430
    %v1432 = vmul.f32 %v1427, %v1431
    %vm1433 = vweird.f32 %v1374
    %vm1434 = vweird.f32 %v1427
    %vm1435 = vmor %vm1433, %vm1434
    %v1436 = vsel %vm1435, %v1427, %v1432
    %v1437 = vrsqrt.pop %v1375
    %v1438 = vmul.f32 %v1437, %v1375
    %v1439 = vmul.f32 %v1438, %v1437
    %v1440 = vmul.f32 0.5, %v1439
    %v1441 = vsub.f32 1.5, %v1440
    %v1442 = vmul.f32 %v1437, %v1441
    %vm1443 = vweird.f32 %v1375
    %vm1444 = vweird.f32 %v1437
    %vm1445 = vmor %vm1443, %vm1444
    %v1446 = vsel %vm1445, %v1437, %v1442
    %v1447 = vrsqrt.pop %v1376
    %v1448 = vmul.f32 %v1447, %v1376
    %v1449 = vmul.f32 %v1448, %v1447
    %v1450 = vmul.f32 0.5, %v1449
    %v1451 = vsub.f32 1.5, %v1450
    %v1452 = vmul.f32 %v1447, %v1451
    %vm1453 = vweird.f32 %v1376
    %vm1454 = vweird.f32 %v1447
    %vm1455 = vmor %vm1453, %vm1454
    %v1456 = vsel %vm1455, %v1447, %v1452
    %v1458 = vperm.slane %v1368, 0
    %v1460 = vmul.f32 %v1458, %v1386
    %v1461 = vmul.f32 %v1458, %v1396
    %v1462 = vmul.f32 %v1458, %v1406
    %v1463 = vmul.f32 %v1458, %v1416
    %v1464 = vmul.f32 %v1458, %v1426
    %v1465 = vmul.f32 %v1458, %v1436
    %v1466 = vmul.f32 %v1458, %v1446
    %v1467 = vmul.f32 %v1458, %v1456
    %v1468 = vmul.f32 %v1263, %v1460
    %v1469 = vmul.f32 %v1264, %v1461
    %v1470 = vmul.f32 %v1265, %v1462
    %v1471 = vmul.f32 %v1266, %v1463
    %v1472 = vmul.f32 %v1267, %v1464
    %v1473 = vmul.f32 %v1268, %v1465
    %v1474 = vmul.f32 %v1269, %v1466
    %v1475 = vmul.f32 %v1270, %v1467
    %s1476 = scalar_lea.vmem %s5, 2
    %v1477 = vld [vmem:[%s1476] sm:$0x1]
    %v1478 = vmul.f32 %v1295, %v1460
    %v1479 = vmul.f32 %v1296, %v1461
    %v1480 = vmul.f32 %v1297, %v1462
    %v1481 = vmul.f32 %v1298, %v1463
    %v1482 = vmul.f32 %v1299, %v1464
    %v1483 = vmul.f32 %v1300, %v1465
    %v1484 = vmul.f32 %v1301, %v1466
    %v1485 = vmul.f32 %v1302, %v1467
    %v1487 = vperm.slane %v1477, 0
    %v1489 = vsub.f32 %v1487, %v1478
    %v1490 = vsub.f32 %v1487, %v1479
    %v1491 = vsub.f32 %v1487, %v1480
    %v1492 = vsub.f32 %v1487, %v1481
    %v1493 = vsub.f32 %v1487, %v1482
    %v1494 = vsub.f32 %v1487, %v1483
    %v1495 = vsub.f32 %v1487, %v1484
    %v1496 = vsub.f32 %v1487, %v1485
    %v1497 = vadd.f32 %v1468, %v1489
    %v1498 = vadd.f32 %v1469, %v1490
    %v1499 = vadd.f32 %v1470, %v1491
    %v1500 = vadd.f32 %v1471, %v1492
    %v1501 = vadd.f32 %v1472, %v1493
    %v1502 = vadd.f32 %v1473, %v1494
    %v1503 = vadd.f32 %v1474, %v1495
    %v1504 = vadd.f32 %v1475, %v1496
    %v1505 = vmax.f32 %v1497, 0.0
    %v1506 = vmax.f32 %v1498, 0.0
    %v1507 = vmax.f32 %v1499, 0.0
    %v1508 = vmax.f32 %v1500, 0.0
    %v1509 = vmax.f32 %v1501, 0.0
    %v1510 = vmax.f32 %v1502, 0.0
    %v1511 = vmax.f32 %v1503, 0.0
    %v1512 = vmax.f32 %v1504, 0.0
    %s1513 = scalar_lea.vmem %s6, 64
    %v1514 = vld [vmem:[%s1513] sm:$0xff]
    %v1515 = vld [vmem:[%s1513 + $0x8] sm:$0xff]
    %v1516 = vld [vmem:[%s1513 + $0x10] sm:$0xff]
    %v1517 = vld [vmem:[%s1513 + $0x18] sm:$0xff]
    %s1518 = scalar_lea.vmem %s7, 2
    %v1519 = vld [vmem:[%s1518] sm:$0x1]
    %v1521 = vperm.slane %v1519, 0
    %v1524 = vsel %vm88, %v1505, 0
    %v1527 = vsel %vm88, %v1506, 0
    %v1530 = vsel %vm88, %v1507, 0
    %v1533 = vsel %vm88, %v1508, 0
    %v1536 = vsel %vm88, %v1509, 0
    %v1539 = vsel %vm88, %v1510, 0
    %v1542 = vsel %vm88, %v1511, 0
    %v1545 = vsel %vm88, %v1512, 0
    %1547 = vmatpush.msra.mxu0 0.0
    %1548 = vmatpush.msra.mxu0 0.0
    %1549 = vmatpush.msra.mxu0 0.0
    %1550 = vmatpush.msra.mxu0 0.0
    %1551 = vmatpush.msra.mxu0 0.0
    %1552 = vmatpush.msra.mxu0 0.0
    %1553 = vmatpush.msra.mxu0 0.0
    %1554 = vmatpush.msra.mxu0 0.0
    %1555 = vmatpush.msra.mxu0 0.0
    %1556 = vmatpush.msra.mxu0 0.0
    %1557 = vmatpush.msra.mxu0 0.0
    %1558 = vmatpush.msra.mxu0 0.0
    %1559 = vmatpush.msra.mxu0 %v1517
    %1560 = vmatpush.msra.mxu0 %v1516
    %1561 = vmatpush.msra.mxu0 %v1515
    %1562 = vmatpush.msra.mxu0 %v1514
    %1563 = vmatmul.f32.gmra.mxu0 %v1524
    %v1564 = vpop.f32.mrf.mxu0
    %v1565 = vadd.f32 %v1521, %v1564
    %1566 = vmatmul.f32.gmra.mxu0 %v1527
    %v1567 = vpop.f32.mrf.mxu0
    %v1568 = vadd.f32 %v1521, %v1567
    %1569 = vmatmul.f32.gmra.mxu0 %v1530
    %v1570 = vpop.f32.mrf.mxu0
    %v1571 = vadd.f32 %v1521, %v1570
    %1572 = vmatmul.f32.gmra.mxu0 %v1533
    %v1573 = vpop.f32.mrf.mxu0
    %v1574 = vadd.f32 %v1521, %v1573
    %1575 = vmatmul.f32.gmra.mxu0 %v1536
    %v1576 = vpop.f32.mrf.mxu0
    %v1577 = vadd.f32 %v1521, %v1576
    %1578 = vmatmul.f32.gmra.mxu0 %v1539
    %v1579 = vpop.f32.mrf.mxu0
    %v1580 = vadd.f32 %v1521, %v1579
    %1581 = vmatmul.f32.gmra.mxu0 %v1542
    %v1582 = vpop.f32.mrf.mxu0
    %v1583 = vadd.f32 %v1521, %v1582
    %1584 = vmatmul.f32.gmra.mxu0 %v1545
    %v1585 = vpop.f32.mrf.mxu0
    %v1586 = vadd.f32 %v1521, %v1585
    %1587 = vdwg.mxu0
    %v1588 = vsel %vm506, %v1565, -2e+09
    %v1589 = vsel %vm507, %v1568, -2e+09
    %v1590 = vsel %vm508, %v1571, -2e+09
    %v1591 = vsel %vm509, %v1574, -2e+09
    %v1592 = vsel %vm510, %v1577, -2e+09
    %v1593 = vsel %vm511, %v1580, -2e+09
    %v1594 = vsel %vm512, %v1583, -2e+09
    %v1595 = vsel %vm513, %v1586, -2e+09
    %v1596 = vsel %vm522, %v1588, -inf
    %v1597 = vrot.slane %v1596, 4
    %v1598 = vmax.f32 %v1596, %v1597
    %v1599 = vrot.slane %v1598, 2
    %v1600 = vmax.f32 %v1598, %v1599
    %v1601 = vrot.slane %v1600, 1
    %v1602 = vmax.f32 %v1600, %v1601
    %v1603 = vsel %vm522, %v1589, -inf
    %v1604 = vrot.slane %v1603, 4
    %v1605 = vmax.f32 %v1603, %v1604
    %v1606 = vrot.slane %v1605, 2
    %v1607 = vmax.f32 %v1605, %v1606
    %v1608 = vrot.slane %v1607, 1
    %v1609 = vmax.f32 %v1607, %v1608
    %v1610 = vsel %vm522, %v1590, -inf
    %v1611 = vrot.slane %v1610, 4
    %v1612 = vmax.f32 %v1610, %v1611
    %v1613 = vrot.slane %v1612, 2
    %v1614 = vmax.f32 %v1612, %v1613
    %v1615 = vrot.slane %v1614, 1
    %v1616 = vmax.f32 %v1614, %v1615
    %v1617 = vsel %vm522, %v1591, -inf
    %v1618 = vrot.slane %v1617, 4
    %v1619 = vmax.f32 %v1617, %v1618
    %v1620 = vrot.slane %v1619, 2
    %v1621 = vmax.f32 %v1619, %v1620
    %v1622 = vrot.slane %v1621, 1
    %v1623 = vmax.f32 %v1621, %v1622
    %v1624 = vsel %vm522, %v1592, -inf
    %v1625 = vrot.slane %v1624, 4
    %v1626 = vmax.f32 %v1624, %v1625
    %v1627 = vrot.slane %v1626, 2
    %v1628 = vmax.f32 %v1626, %v1627
    %v1629 = vrot.slane %v1628, 1
    %v1630 = vmax.f32 %v1628, %v1629
    %v1631 = vsel %vm522, %v1593, -inf
    %v1632 = vrot.slane %v1631, 4
    %v1633 = vmax.f32 %v1631, %v1632
    %v1634 = vrot.slane %v1633, 2
    %v1635 = vmax.f32 %v1633, %v1634
    %v1636 = vrot.slane %v1635, 1
    %v1637 = vmax.f32 %v1635, %v1636
    %v1638 = vsel %vm522, %v1594, -inf
    %v1639 = vrot.slane %v1638, 4
    %v1640 = vmax.f32 %v1638, %v1639
    %v1641 = vrot.slane %v1640, 2
    %v1642 = vmax.f32 %v1640, %v1641
    %v1643 = vrot.slane %v1642, 1
    %v1644 = vmax.f32 %v1642, %v1643
    %v1645 = vsel %vm522, %v1595, -inf
    %v1646 = vrot.slane %v1645, 4
    %v1647 = vmax.f32 %v1645, %v1646
    %v1648 = vrot.slane %v1647, 2
    %v1649 = vmax.f32 %v1647, %v1648
    %v1650 = vrot.slane %v1649, 1
    %v1651 = vmax.f32 %v1649, %v1650
    %vm1652 = vcmp.lt.s32.totalorder %v46, 8
    %v1653 = vmax.f32 %v1602, -2e+09
    %v1654 = vmax.f32 %v1609, -2e+09
    %v1655 = vmax.f32 %v1616, -2e+09
    %v1656 = vmax.f32 %v1623, -2e+09
    %v1657 = vmax.f32 %v1630, -2e+09
    %v1658 = vmax.f32 %v1637, -2e+09
    %v1659 = vmax.f32 %v1644, -2e+09
    %v1660 = vmax.f32 %v1651, -2e+09
    %v1661 = vsel %vm1652, 1, 0
    %1662 = vset.pattern.permute.xlu0 0
    %1663 = vperm.xlu0 %1662, %v1661
    %v1664 = vpop.permute.xlu0 %1663
    %vm1665 = vcmp.eq.s32.totalorder %v1664, 1
    %v1674 = vsel %vm657, %v1654, %v1653
    %v1675 = vsel %vm659, %v1655, %v1674
    %v1676 = vsel %vm661, %v1656, %v1675
    %v1677 = vsel %vm663, %v1657, %v1676
    %v1678 = vsel %vm665, %v1658, %v1677
    %v1679 = vsel %vm667, %v1659, %v1678
    %v1680 = vsel %vm669, %v1660, %v1679
    %v1690 = vsel %vm657, %v1609, %v1602
    %v1691 = vsel %vm659, %v1616, %v1690
    %v1692 = vsel %vm661, %v1623, %v1691
    %v1693 = vsel %vm663, %v1630, %v1692
    %v1694 = vsel %vm665, %v1637, %v1693
    %v1695 = vsel %vm667, %v1644, %v1694
    %v1696 = vsel %vm669, %v1651, %v1695
    %v1698 = vsel %vm1665, %v1680, %v1696
    %1699 = vst.msk [vmem:[#allocation5] sm:$0xff] %vm522, %v1698
    %1700 = vrot.lane.b32.xlu0 %v1696, 16
    %v1701 = vpop.permute.xlu0 %1700
    %vm1703 = vcmask 261248
    %1704 = vst.msk [vmem:[#allocation5] sm:$0xff] %vm1703, %v1701
    // Predicated region
    $region38: #{tpu_custom_call.1} parent=1 // pred_check
      _
    $region39: #{tpu_custom_call.1} parent=1 // pred_check_branch
      %1706 = sbr.rel (0) target = $region41
    $region40: #{tpu_custom_call.1} parent=1 // pred_region
      %1708 = vsyncadd [#allocation4], 0
      %s1710 = sshll.u32 [#allocation5], 4
      %s1711 = int_to_ptr.vmem [resolvable:$true] %s1710
      %s1712 = sshll.u32 %s8, 4
      %s1713 = int_to_ptr.hbm [resolvable:$true] %s1712
      %1715 = dma.vmem_to_hbm [thread:$0]  %s1711, 128, %s1713, [#allocation4]
    $region41: #{tpu_custom_call.1} parent=1 // pred_fallthru
      _
    // Predicated region
    $region42: #{tpu_custom_call.1} parent=1 // pred_check
      _
    $region43: #{tpu_custom_call.1} parent=1 // pred_check_branch
      %1717 = sbr.rel (0) target = $region45
    $region44: #{tpu_custom_call.1} parent=1 // pred_region
      %1719 = dma.done [#allocation4], 128
    $region45: #{tpu_custom_call.1} parent=1 // pred_fallthru
      _
    %1720 = vsyncpa [#allocation3], 1
    %1721 = vsyncpa [#allocation4], 1

</llo_original>
